<compile_context>
chip_gen: v7x
topology: tpu7x:2x2x1
jax: 0.10.0
libtpu: 0.0.40
codegen_flags: <defaults>
</compile_context>

<pallas_src>
import math as m
from functools import partial

import numpy as np
import jax
import jax.numpy as jnp
from jax.experimental import pallas as pl
from jax.experimental.pallas import tpu as pltpu

LANE = 128                      # lanes per vreg / VMEM tile
SUB = 8                         # sublanes per vreg / VMEM tile
NT_CAP = 32 * 1024              # max lanes (points) per block, batched layout
ST_CAP = 2048                   # max sublane rows per block, folded layout
PLANE_CAP = SUB * NT_CAP        # max elems per coordinate plane per block
BT_CAP = 128                    # max clouds (sublane rows) per block
VMEM_LIMIT = 48 * 1024 * 1024   # fits v5e/v6e/v7x (v7x physical VMEM = 64 MiB)


# ------------------------------------------------------------------ rotations
def rx(theta):
    return np.array([[1.0, 0.0, 0.0],
                     [0.0, m.cos(theta), -m.sin(theta)],
                     [0.0, m.sin(theta),  m.cos(theta)]], dtype=np.float32)


def ry(theta):
    return np.array([[ m.cos(theta), 0.0, m.sin(theta)],
                     [ 0.0,          1.0, 0.0],
                     [-m.sin(theta), 0.0, m.cos(theta)]], dtype=np.float32)


def rz(theta):
    return np.array([[m.cos(theta), -m.sin(theta), 0.0],
                     [m.sin(theta),  m.cos(theta), 0.0],
                     [0.0,           0.0,          1.0]], dtype=np.float32)


def _active_rotation_coefs(axis_to_rotate, rotation_angle):
    """Flat (9*A,) f32 array holding only the ACTIVE rotation matrices, in order."""
    fns = (rx, ry, rz)
    mats = [fns[i](rotation_angle[i]) for i in range(3) if axis_to_rotate[i]]
    if not mats:
        mats = [np.zeros((3, 3), np.float32)]           # never read by the kernel
    return jnp.asarray(np.stack(mats).reshape(-1), dtype=jnp.float32)


# --------------------------------------------------------------------- kernel
def _make_kernel(*, num_active, per_row_min, pass_axis, tile_axis):
    """num_active: # of rotation stages (static). per_row_min: True -> each
    sublane row is a cloud (min over lanes); False -> the whole plane is one
    cloud (min over both axes)."""
    num_stages = num_active + 1        # mins m_0 .. m_{num_active}
    num_passes = num_active + 2        # min passes + final apply pass

    def kernel(coef_ref, v_ref, out_ref, mins_ref):
        # coef_ref : (9*max(A,1),) f32 SMEM -- active R's, row-major.
        # v_ref    : (3, Rt, Lt) f32 block -- coordinate planes (dense tiles).
        # out_ref  : (3, Rt, Lt) f32 block (aliased with the input in HBM).
        # mins_ref : (num_stages, 3, mins_rows, 1) f32 VMEM scratch.
        p = pl.program_id(pass_axis)
        t = pl.program_id(tile_axis)

        def coords():
            return [v_ref[c] for c in range(3)]

        def rot(rows, s):                      # stage s in 1..num_active (static)
            base = 9 * (s - 1)
            # (points @ R)[:, col] = sum_k points[:, k] * R[k, col]; R entries
            # are SMEM scalars -> free VPU broadcast, no MXU, no VMEM R loads.
            return [rows[0] * coef_ref[base + col]
                    + rows[1] * coef_ref[base + 3 + col]
                    + rows[2] * coef_ref[base + 6 + col]
                    for col in range(3)]

        def minus_min(rows, s):
            return [rows[c] - mins_ref[s, c] for c in range(3)]

        def tile_min(u):
            mv = jnp.min(u, axis=-1, keepdims=True)      # cross-lane reduce
            if not per_row_min:
                mv = jnp.min(mv, axis=0, keepdims=True)  # + cross-sublane reduce
            return mv

        def chain(n_done):
            # Apply the first n_done completed stages: stage 0 = initial
            # min-shift; stages >= 1 = rotate + min-shift + round (half-to-even).
            rows = coords()
            if n_done >= 1:
                rows = minus_min(rows, 0)
            for s in range(1, n_done):
                rows = [jnp.round(r) for r in minus_min(rot(rows, s), s)]
            return rows

        # Min-accumulation passes: pass pp computes m_pp over the whole cloud,
        # tile by tile, recomputing the (cheap, VPU-only) chain from the input.
        for pp in range(num_stages):
            @pl.when(p == pp)
            def _(pp=pp):
                u = coords() if pp == 0 else rot(chain(pp), pp)
                for c in range(3):
                    mv = tile_min(u[c])
                    prev = jnp.where(t == 0, jnp.full_like(mv, jnp.inf),
                                     mins_ref[pp, c])
                    mins_ref[pp, c] = jnp.minimum(prev, mv)

        # Final pass: apply the full chain and store dense coordinate planes.
        @pl.when(p == num_passes - 1)
        def _():
            rows = chain(num_stages)
            for c in range(3):
                out_ref[c] = rows[c]

    return kernel


# ------------------------------------------------------------ jitted launcher
@partial(jax.jit, static_argnames=("num_active", "per_row_min", "rt", "lt"))
def _rotate_planes(planes, coefs, *, num_active, per_row_min, rt, lt):
    """Rotation chain on plane-layout points.  planes: (3, R, L) f32 with
    R % rt == 0 and L % lt == 0 (use points_to_planes_* to build them)."""
    _, R, L = planes.shape
    assert R % rt == 0 and L % lt == 0
    nr, nl = R // rt, L // lt
    num_passes = num_active + 2
    num_stages = num_active + 1
    last = num_passes - 1

    if per_row_min:
        # Batched: rows = clouds.  Grid (batch-tile, pass, N-tile).
        grid = (nr, num_passes, nl)
        pass_axis, tile_axis = 1, 2
        in_map = lambda r, p, n: (0, r, n)
        if nl == 1:
            out_map = lambda r, p, n: (0, r, 0)
        else:
            # Pin the output block during min passes so only final-pass data is
            # ever flushed to the (aliased) HBM buffer.
            out_map = lambda r, p, n: (0, r, jnp.where(p == last, n, 0))
        dims = ("parallel", "arbitrary", "arbitrary")
        mins_rows = rt
    else:
        # Folded single cloud: rows = chunks of one cloud.  Grid (pass, S-tile).
        assert lt == L
        grid = (num_passes, nr)
        pass_axis, tile_axis = 0, 1
        in_map = lambda p, r: (0, r, 0)
        if nr == 1:
            out_map = lambda p, r: (0, r, 0)
        else:
            out_map = lambda p, r: (0, jnp.where(p == last, r, 0), 0)
        # TODO(synk): on v7x (2 TCs) split this single-cloud reduce across cores
        # (core_map + CMEM partial-min combine); both axes here carry the
        # pass/min dependency so neither can be marked "parallel".
        dims = ("arbitrary", "arbitrary")
        mins_rows = 1

    kernel = _make_kernel(num_active=num_active, per_row_min=per_row_min,
                          pass_axis=pass_axis, tile_axis=tile_axis)

    return pl.pallas_call(
        kernel,
        out_shape=jax.ShapeDtypeStruct(planes.shape, jnp.float32),
        grid=grid,
        in_specs=[pl.BlockSpec(memory_space=pltpu.MemorySpace.SMEM),   # coefs
                  pl.BlockSpec((3, rt, lt), in_map)],                  # points
        out_specs=pl.BlockSpec((3, rt, lt), out_map),
        scratch_shapes=[pltpu.VMEM((num_stages, 3, mins_rows, 1), jnp.float32)],
        input_output_aliases={1: 0},            # rotate in place, no extra HBM
        compiler_params=pltpu.CompilerParams(
            dimension_semantics=dims,
            vmem_limit_bytes=VMEM_LIMIT),
    )(coefs, planes)


# ------------------------------------------------------- layout conversions
def points_to_planes_batched(V):
    """(B, N, 3) -> ((3, Bpad, Npad) planes, bt, nt).  One transpose + one
    edge-pad (replicates last point / last cloud: min-neutral).  Keep this
    layout persistent across a pipeline to avoid repeated HBM round trips.
    Assumes N >= 1 and a uniform N across the batch."""
    V = jnp.asarray(V, jnp.float32)
    B, N, _ = V.shape
    n_pad = pl.cdiv(N, LANE) * LANE
    if n_pad > NT_CAP:
        nt = NT_CAP
        n_pad = pl.cdiv(n_pad, NT_CAP) * NT_CAP
    else:
        nt = n_pad
    bt = min(BT_CAP, max(SUB, (PLANE_CAP // nt) // SUB * SUB),
             pl.cdiv(B, SUB) * SUB)
    b_pad = pl.cdiv(B, bt) * bt
    planes = jnp.transpose(V, (2, 0, 1))                         # (3, B, N)
    planes = jnp.pad(planes, ((0, 0), (0, b_pad - B), (0, n_pad - N)),
                     mode="edge")
    return planes, bt, nt


def points_to_planes_single(V):
    """(N, 3) -> ((3, Spad, 128) folded planes, st).  Point axis folded onto
    sublanes so a single cloud still fills every (8,128) tile."""
    V = jnp.asarray(V, jnp.float32)
    N = V.shape[0]
    s_pad = pl.cdiv(pl.cdiv(N, LANE), SUB) * SUB
    if s_pad > ST_CAP:
        st = ST_CAP
        s_pad = pl.cdiv(s_pad, ST_CAP) * ST_CAP
    else:
        st = s_pad
    planes = jnp.pad(V.T, ((0, 0), (0, s_pad * LANE - N)), mode="edge")
    return planes.reshape(3, s_pad, LANE), st


# ------------------------------------------------------------ public wrappers
def rotation_augmentation(V, Colors, axis_to_rotate, rotation_angle):
    """Single-cloud RotationAugmentation.forward with given (sampled) params."""
    num_active = int(sum(bool(a) for a in axis_to_rotate))
    coefs = _active_rotation_coefs(axis_to_rotate, rotation_angle)
    N = V.shape[0]
    planes, st = points_to_planes_single(V)
    out = _rotate_planes(planes, coefs, num_active=num_active,
                         per_row_min=False, rt=st, lt=LANE)
    points = out.reshape(3, -1)[:, :N].T                         # (N, 3)
    return points, Colors                                        # Colors pass-through


def rotation_augmentation_batched(Vb, Colorsb, axis_to_rotate, rotation_angle):
    """B clouds sharing the same sampled params: one kernel launch."""
    num_active = int(sum(bool(a) for a in axis_to_rotate))
    coefs = _active_rotation_coefs(axis_to_rotate, rotation_angle)
    B, N, _ = Vb.shape
    planes, bt, nt = points_to_planes_batched(Vb)
    out = _rotate_planes(planes, coefs, num_active=num_active,
                         per_row_min=True, rt=bt, lt=nt)
    points = jnp.transpose(out[:, :B, :N], (1, 2, 0))            # (B, N, 3)
    return points, Colorsb


# ------------------------------------------------------------------ reference
def reference_forward(V, axis_to_rotate, rotation_angle):
    """Pure numpy (float32) mirror of the PyTorch/numpy forward."""
    Rfns = [rx, ry, rz]
    p = V.astype(np.float32)
    p = p - np.min(p, axis=0)
    for i in range(3):
        if axis_to_rotate[i]:
            p = p @ Rfns[i](rotation_angle[i])
            p = p - np.min(p, axis=0)
            p = np.round(p)
    return p.astype(np.float32)


def _allclose_allowing_round_flips(out, ref):
    """Values sitting exactly on a .5 boundary may round differently between the
    f32 kernel and the f32 numpy reference (last-ulp FMA differences); allow a
    tiny fraction of +-1 flips, everything else must match tightly."""
    diff = np.abs(np.asarray(out) - ref)
    flips = diff > 1e-3
    assert np.all(diff[flips] <= 1.0 + 1e-3), float(diff.max())
    assert flips.mean() <= 0.01, float(flips.mean())


# ----------------------------------------------------------------------- main
if __name__ == "__main__":
    key = jax.random.PRNGKey(0)
    kv, kc = jax.random.split(key)

    N = 64
    V = jax.random.uniform(kv, (N, 3), jnp.float32, minval=-50.0, maxval=50.0)
    Colors = jax.random.uniform(kc, (N, 3), jnp.float32)

    # Deterministic stand-in for get_params() (module samples these host-side).
    rotation_range = np.arange(start=0.0, stop=m.pi, step=m.pi / 18)
    axis_to_rotate = (True, False, True)
    rotation_angle = (float(rotation_range[2]), float(rotation_range[5]),
                      float(rotation_range[9]))

    # 1) single-cloud forward (module semantics), folded-sublane layout.
    pts, cols = rotation_augmentation(V, Colors, axis_to_rotate, rotation_angle)
    pts = jax.block_until_ready(pts)
    ref = reference_forward(np.asarray(V), axis_to_rotate, rotation_angle)
    np.testing.assert_allclose(np.asarray(pts), ref, rtol=1e-4, atol=1e-3)
    np.testing.assert_allclose(np.asarray(jax.block_until_ready(cols)),
                               np.asarray(Colors))

    # 2) batched path: 3 clouds sharing params, one launch (sublane-dense).
    B = 3
    perm1 = jnp.asarray(np.random.RandomState(1).permutation(N))
    perm2 = jnp.asarray(np.random.RandomState(2).permutation(N))
    Vb = jnp.stack([V, V[perm1], V[perm2]], axis=0)              # (B, N, 3)
    Cb = jnp.stack([Colors] * B, axis=0)
    pts_b, _ = rotation_augmentation_batched(Vb, Cb, axis_to_rotate,
                                             rotation_angle)
    pts_b = jax.block_until_ready(pts_b)
    for b in range(B):
        ref_b = reference_forward(np.asarray(Vb[b]), axis_to_rotate,
                                  rotation_angle)
        np.testing.assert_allclose(np.asarray(pts_b[b]), ref_b,
                                   rtol=1e-4, atol=1e-3)

    # 3) all three axes active, single cloud, N not a multiple of 128.
    V2 = jax.random.uniform(jax.random.PRNGKey(3), (200, 3), jnp.float32,
                            minval=-20.0, maxval=80.0)
    C2 = jax.random.uniform(jax.random.PRNGKey(4), (200, 3), jnp.float32)
    ax2 = (True, True, True)
    ang2 = (float(rotation_range[1]), float(rotation_range[7]),
            float(rotation_range[4]))
    pts2, _ = rotation_augmentation(V2, C2, ax2, ang2)
    pts2 = jax.block_until_ready(pts2)
    ref2 = reference_forward(np.asarray(V2), ax2, ang2)
    _allclose_allowing_round_flips(pts2, ref2)

    # 4) no active axes (min-shift only, no rounding), batched.
    ax0 = (False, False, False)
    pts0, _ = rotation_augmentation_batched(Vb[:2], Cb[:2], ax0, rotation_angle)
    pts0 = jax.block_until_ready(pts0)
    for b in range(2):
        ref0 = reference_forward(np.asarray(Vb[b]), ax0, rotation_angle)
        np.testing.assert_allclose(np.asarray(pts0[b]), ref0,
                                   rtol=1e-4, atol=1e-3)

    print("KERNEL_OK")
</pallas_src>

<mosaic_0001>
module attributes {stable_mosaic.version = 11 : i64} {
  func.func @kernel(%arg0: i32, %arg1: i32, %arg2: memref<18xf32, #tpu.memory_space<smem>>, %arg3: memref<3x8x128xf32, #tpu.memory_space<vmem>>, %arg4: memref<3x8x128xf32, #tpu.memory_space<vmem>>, %arg5: memref<3x3x1x1xf32, #tpu.memory_space<vmem>>) attributes {dimension_semantics = [#tpu.dimension_semantics<arbitrary>, #tpu.dimension_semantics<arbitrary>], iteration_bounds = array<i64: 4, 1>, scalar_prefetch = 0 : i64, scratch_operands = 1 : i64, tpu.core_type = #tpu.core_type<tc>, window_params = [{transform_indices = @transform_0, window_bounds = array<i64: 18>}, {transform_indices = @transform_1, window_bounds = array<i64: 3, 8, 128>}, {transform_indices = @transform_2, window_bounds = array<i64: 3, 8, 128>}]} {
    %c0_i32 = arith.constant 0 : i32
    %0 = arith.cmpi eq, %arg0, %c0_i32 : i32
    %1 = arith.extui %0 : i1 to i32
    %c0_i32_0 = arith.constant 0 : i32
    %2 = arith.cmpi ne, %1, %c0_i32_0 : i32
    scf.if %2 {
      %c0 = arith.constant 0 : index
      %c0_4 = arith.constant 0 : index
      %c0_5 = arith.constant 0 : index
      %12 = vector.load %arg3[%c0, %c0_4, %c0_5] : memref<3x8x128xf32, #tpu.memory_space<vmem>>, vector<1x8x128xf32>
      %13 = vector.shape_cast %12 : vector<1x8x128xf32> to vector<8x128xf32>
      %c1 = arith.constant 1 : index
      %c0_6 = arith.constant 0 : index
      %c0_7 = arith.constant 0 : index
      %14 = vector.load %arg3[%c1, %c0_6, %c0_7] : memref<3x8x128xf32, #tpu.memory_space<vmem>>, vector<1x8x128xf32>
      %15 = vector.shape_cast %14 : vector<1x8x128xf32> to vector<8x128xf32>
      %c2 = arith.constant 2 : index
      %c0_8 = arith.constant 0 : index
      %c0_9 = arith.constant 0 : index
      %16 = vector.load %arg3[%c2, %c0_8, %c0_9] : memref<3x8x128xf32, #tpu.memory_space<vmem>>, vector<1x8x128xf32>
      %17 = vector.shape_cast %16 : vector<1x8x128xf32> to vector<8x128xf32>
      %cst = arith.constant dense<0x7F800000> : vector<8xf32>
      %18 = vector.multi_reduction <minimumf>, %13, %cst [1] : vector<8x128xf32> to vector<8xf32>
      %19 = vector.shape_cast %18 : vector<8xf32> to vector<8x1xf32>
      %cst_10 = arith.constant dense<0x7F800000> : vector<1xf32>
      %20 = vector.multi_reduction <minimumf>, %19, %cst_10 [0] : vector<8x1xf32> to vector<1xf32>
      %21 = vector.shape_cast %20 : vector<1xf32> to vector<1x1xf32>
      %c0_i32_11 = arith.constant 0 : i32
      %22 = arith.cmpi eq, %arg1, %c0_i32_11 : i32
      %cst_12 = arith.constant 0x7F800000 : f32
      %23 = vector.broadcast %cst_12 : f32 to vector<1x1xf32>
      %c0_13 = arith.constant 0 : index
      %c0_14 = arith.constant 0 : index
      %c0_15 = arith.constant 0 : index
      %c0_16 = arith.constant 0 : index
      %24 = vector.load %arg5[%c0_13, %c0_14, %c0_15, %c0_16] : memref<3x3x1x1xf32, #tpu.memory_space<vmem>>, vector<1x1x1x1xf32>
      %25 = vector.shape_cast %24 : vector<1x1x1x1xf32> to vector<1x1xf32>
      %26 = arith.select %22, %23, %25 : vector<1x1xf32>
      %27 = arith.minimumf %26, %21 : vector<1x1xf32>
      %c0_17 = arith.constant 0 : index
      %c0_18 = arith.constant 0 : index
      %c0_19 = arith.constant 0 : index
      %c0_20 = arith.constant 0 : index
      %28 = vector.load %arg5[%c0_17, %c0_18, %c0_19, %c0_20] : memref<3x3x1x1xf32, #tpu.memory_space<vmem>>, vector<1x1x1x1xf32>
      %29 = vector.shape_cast %28 : vector<1x1x1x1xf32> to vector<1x1xf32>
      %30 = vector.shape_cast %27 : vector<1x1xf32> to vector<1x1x1x1xf32>
      tpu.vector_store %arg5[%c0_17, %c0_18, %c0_19, %c0_20], %30 {strides = array<i32>} : memref<3x3x1x1xf32, #tpu.memory_space<vmem>>, vector<1x1x1x1xf32>,
      %cst_21 = arith.constant dense<0x7F800000> : vector<8xf32>
      %31 = vector.multi_reduction <minimumf>, %15, %cst_21 [1] : vector<8x128xf32> to vector<8xf32>
      %32 = vector.shape_cast %31 : vector<8xf32> to vector<8x1xf32>
      %cst_22 = arith.constant dense<0x7F800000> : vector<1xf32>
      %33 = vector.multi_reduction <minimumf>, %32, %cst_22 [0] : vector<8x1xf32> to vector<1xf32>
      %34 = vector.shape_cast %33 : vector<1xf32> to vector<1x1xf32>
      %c0_i32_23 = arith.constant 0 : i32
      %35 = arith.cmpi eq, %arg1, %c0_i32_23 : i32
      %cst_24 = arith.constant 0x7F800000 : f32
      %36 = vector.broadcast %cst_24 : f32 to vector<1x1xf32>
      %c0_25 = arith.constant 0 : index
      %c1_26 = arith.constant 1 : index
      %c0_27 = arith.constant 0 : index
      %c0_28 = arith.constant 0 : index
      %37 = vector.load %arg5[%c0_25, %c1_26, %c0_27, %c0_28] : memref<3x3x1x1xf32, #tpu.memory_space<vmem>>, vector<1x1x1x1xf32>
      %38 = vector.shape_cast %37 : vector<1x1x1x1xf32> to vector<1x1xf32>
      %39 = arith.select %35, %36, %38 : vector<1x1xf32>
      %40 = arith.minimumf %39, %34 : vector<1x1xf32>
      %c0_29 = arith.constant 0 : index
      %c1_30 = arith.constant 1 : index
      %c0_31 = arith.constant 0 : index
      %c0_32 = arith.constant 0 : index
      %41 = vector.load %arg5[%c0_29, %c1_30, %c0_31, %c0_32] : memref<3x3x1x1xf32, #tpu.memory_space<vmem>>, vector<1x1x1x1xf32>
      %42 = vector.shape_cast %41 : vector<1x1x1x1xf32> to vector<1x1xf32>
      %43 = vector.shape_cast %40 : vector<1x1xf32> to vector<1x1x1x1xf32>
      tpu.vector_store %arg5[%c0_29, %c1_30, %c0_31, %c0_32], %43 {strides = array<i32>} : memref<3x3x1x1xf32, #tpu.memory_space<vmem>>, vector<1x1x1x1xf32>,
      %cst_33 = arith.constant dense<0x7F800000> : vector<8xf32>
      %44 = vector.multi_reduction <minimumf>, %17, %cst_33 [1] : vector<8x128xf32> to vector<8xf32>
      %45 = vector.shape_cast %44 : vector<8xf32> to vector<8x1xf32>
      %cst_34 = arith.constant dense<0x7F800000> : vector<1xf32>
      %46 = vector.multi_reduction <minimumf>, %45, %cst_34 [0] : vector<8x1xf32> to vector<1xf32>
      %47 = vector.shape_cast %46 : vector<1xf32> to vector<1x1xf32>
      %c0_i32_35 = arith.constant 0 : i32
      %48 = arith.cmpi eq, %arg1, %c0_i32_35 : i32
      %cst_36 = arith.constant 0x7F800000 : f32
      %49 = vector.broadcast %cst_36 : f32 to vector<1x1xf32>
      %c0_37 = arith.constant 0 : index
      %c2_38 = arith.constant 2 : index
      %c0_39 = arith.constant 0 : index
      %c0_40 = arith.constant 0 : index
      %50 = vector.load %arg5[%c0_37, %c2_38, %c0_39, %c0_40] : memref<3x3x1x1xf32, #tpu.memory_space<vmem>>, vector<1x1x1x1xf32>
      %51 = vector.shape_cast %50 : vector<1x1x1x1xf32> to vector<1x1xf32>
      %52 = arith.select %48, %49, %51 : vector<1x1xf32>
      %53 = arith.minimumf %52, %47 : vector<1x1xf32>
      %c0_41 = arith.constant 0 : index
      %c2_42 = arith.constant 2 : index
      %c0_43 = arith.constant 0 : index
      %c0_44 = arith.constant 0 : index
      %54 = vector.load %arg5[%c0_41, %c2_42, %c0_43, %c0_44] : memref<3x3x1x1xf32, #tpu.memory_space<vmem>>, vector<1x1x1x1xf32>
      %55 = vector.shape_cast %54 : vector<1x1x1x1xf32> to vector<1x1xf32>
      %56 = vector.shape_cast %53 : vector<1x1xf32> to vector<1x1x1x1xf32>
      tpu.vector_store %arg5[%c0_41, %c2_42, %c0_43, %c0_44], %56 {strides = array<i32>} : memref<3x3x1x1xf32, #tpu.memory_space<vmem>>, vector<1x1x1x1xf32>,
    } else {
    }
    %c1_i32 = arith.constant 1 : i32
    %3 = arith.cmpi eq, %arg0, %c1_i32 : i32
    %4 = arith.extui %3 : i1 to i32
    %c0_i32_1 = arith.constant 0 : i32
    %5 = arith.cmpi ne, %4, %c0_i32_1 : i32
    scf.if %5 {
      %c0 = arith.constant 0 : index
      %c0_4 = arith.constant 0 : index
      %c0_5 = arith.constant 0 : index
      %12 = vector.load %arg3[%c0, %c0_4, %c0_5] : memref<3x8x128xf32, #tpu.memory_space<vmem>>, vector<1x8x128xf32>
      %13 = vector.shape_cast %12 : vector<1x8x128xf32> to vector<8x128xf32>
      %c1 = arith.constant 1 : index
      %c0_6 = arith.constant 0 : index
      %c0_7 = arith.constant 0 : index
      %14 = vector.load %arg3[%c1, %c0_6, %c0_7] : memref<3x8x128xf32, #tpu.memory_space<vmem>>, vector<1x8x128xf32>
      %15 = vector.shape_cast %14 : vector<1x8x128xf32> to vector<8x128xf32>
      %c2 = arith.constant 2 : index
      %c0_8 = arith.constant 0 : index
      %c0_9 = arith.constant 0 : index
      %16 = vector.load %arg3[%c2, %c0_8, %c0_9] : memref<3x8x128xf32, #tpu.memory_space<vmem>>, vector<1x8x128xf32>
      %17 = vector.shape_cast %16 : vector<1x8x128xf32> to vector<8x128xf32>
      %c0_10 = arith.constant 0 : index
      %c0_11 = arith.constant 0 : index
      %c0_12 = arith.constant 0 : index
      %c0_13 = arith.constant 0 : index
      %18 = vector.load %arg5[%c0_10, %c0_11, %c0_12, %c0_13] : memref<3x3x1x1xf32, #tpu.memory_space<vmem>>, vector<1x1x1x1xf32>
      %19 = vector.shape_cast %18 : vector<1x1x1x1xf32> to vector<1x1xf32>
      %20 = vector.broadcast %19 : vector<1x1xf32> to vector<8x128xf32>
      %21 = arith.subf %13, %20 : vector<8x128xf32>
      %c0_14 = arith.constant 0 : index
      %c1_15 = arith.constant 1 : index
      %c0_16 = arith.constant 0 : index
      %c0_17 = arith.constant 0 : index
      %22 = vector.load %arg5[%c0_14, %c1_15, %c0_16, %c0_17] : memref<3x3x1x1xf32, #tpu.memory_space<vmem>>, vector<1x1x1x1xf32>
      %23 = vector.shape_cast %22 : vector<1x1x1x1xf32> to vector<1x1xf32>
      %24 = vector.broadcast %23 : vector<1x1xf32> to vector<8x128xf32>
      %25 = arith.subf %15, %24 : vector<8x128xf32>
      %c0_18 = arith.constant 0 : index
      %c2_19 = arith.constant 2 : index
      %c0_20 = arith.constant 0 : index
      %c0_21 = arith.constant 0 : index
      %26 = vector.load %arg5[%c0_18, %c2_19, %c0_20, %c0_21] : memref<3x3x1x1xf32, #tpu.memory_space<vmem>>, vector<1x1x1x1xf32>
      %27 = vector.shape_cast %26 : vector<1x1x1x1xf32> to vector<1x1xf32>
      %28 = vector.broadcast %27 : vector<1x1xf32> to vector<8x128xf32>
      %29 = arith.subf %17, %28 : vector<8x128xf32>
      %c0_22 = arith.constant 0 : index
      %30 = memref.load %arg2[%c0_22] : memref<18xf32, #tpu.memory_space<smem>>
      %31 = vector.broadcast %30 : f32 to vector<8x128xf32>
      %32 = arith.mulf %21, %31 : vector<8x128xf32>
      %c3 = arith.constant 3 : index
      %33 = memref.load %arg2[%c3] : memref<18xf32, #tpu.memory_space<smem>>
      %34 = vector.broadcast %33 : f32 to vector<8x128xf32>
      %35 = arith.mulf %25, %34 : vector<8x128xf32>
      %36 = arith.addf %32, %35 : vector<8x128xf32>
      %c6 = arith.constant 6 : index
      %37 = memref.load %arg2[%c6] : memref<18xf32, #tpu.memory_space<smem>>
      %38 = vector.broadcast %37 : f32 to vector<8x128xf32>
      %39 = arith.mulf %29, %38 : vector<8x128xf32>
      %40 = arith.addf %36, %39 : vector<8x128xf32>
      %c1_23 = arith.constant 1 : index
      %41 = memref.load %arg2[%c1_23] : memref<18xf32, #tpu.memory_space<smem>>
      %42 = vector.broadcast %41 : f32 to vector<8x128xf32>
      %43 = arith.mulf %21, %42 : vector<8x128xf32>
      %c4 = arith.constant 4 : index
      %44 = memref.load %arg2[%c4] : memref<18xf32, #tpu.memory_space<smem>>
      %45 = vector.broadcast %44 : f32 to vector<8x128xf32>
      %46 = arith.mulf %25, %45 : vector<8x128xf32>
      %47 = arith.addf %43, %46 : vector<8x128xf32>
      %c7 = arith.constant 7 : index
      %48 = memref.load %arg2[%c7] : memref<18xf32, #tpu.memory_space<smem>>
      %49 = vector.broadcast %48 : f32 to vector<8x128xf32>
      %50 = arith.mulf %29, %49 : vector<8x128xf32>
      %51 = arith.addf %47, %50 : vector<8x128xf32>
      %c2_24 = arith.constant 2 : index
      %52 = memref.load %arg2[%c2_24] : memref<18xf32, #tpu.memory_space<smem>>
      %53 = vector.broadcast %52 : f32 to vector<8x128xf32>
      %54 = arith.mulf %21, %53 : vector<8x128xf32>
      %c5 = arith.constant 5 : index
      %55 = memref.load %arg2[%c5] : memref<18xf32, #tpu.memory_space<smem>>
      %56 = vector.broadcast %55 : f32 to vector<8x128xf32>
      %57 = arith.mulf %25, %56 : vector<8x128xf32>
      %58 = arith.addf %54, %57 : vector<8x128xf32>
      %c8 = arith.constant 8 : index
      %59 = memref.load %arg2[%c8] : memref<18xf32, #tpu.memory_space<smem>>
      %60 = vector.broadcast %59 : f32 to vector<8x128xf32>
      %61 = arith.mulf %29, %60 : vector<8x128xf32>
      %62 = arith.addf %58, %61 : vector<8x128xf32>
      %cst = arith.constant dense<0x7F800000> : vector<8xf32>
      %63 = vector.multi_reduction <minimumf>, %40, %cst [1] : vector<8x128xf32> to vector<8xf32>
      %64 = vector.shape_cast %63 : vector<8xf32> to vector<8x1xf32>
      %cst_25 = arith.constant dense<0x7F800000> : vector<1xf32>
      %65 = vector.multi_reduction <minimumf>, %64, %cst_25 [0] : vector<8x1xf32> to vector<1xf32>
      %66 = vector.shape_cast %65 : vector<1xf32> to vector<1x1xf32>
      %c0_i32_26 = arith.constant 0 : i32
      %67 = arith.cmpi eq, %arg1, %c0_i32_26 : i32
      %cst_27 = arith.constant 0x7F800000 : f32
      %68 = vector.broadcast %cst_27 : f32 to vector<1x1xf32>
      %c1_28 = arith.constant 1 : index
      %c0_29 = arith.constant 0 : index
      %c0_30 = arith.constant 0 : index
      %c0_31 = arith.constant 0 : index
      %69 = vector.load %arg5[%c1_28, %c0_29, %c0_30, %c0_31] : memref<3x3x1x1xf32, #tpu.memory_space<vmem>>, vector<1x1x1x1xf32>
      %70 = vector.shape_cast %69 : vector<1x1x1x1xf32> to vector<1x1xf32>
      %71 = arith.select %67, %68, %70 : vector<1x1xf32>
      %72 = arith.minimumf %71, %66 : vector<1x1xf32>
      %c1_32 = arith.constant 1 : index
      %c0_33 = arith.constant 0 : index
      %c0_34 = arith.constant 0 : index
      %c0_35 = arith.constant 0 : index
      %73 = vector.load %arg5[%c1_32, %c0_33, %c0_34, %c0_35] : memref<3x3x1x1xf32, #tpu.memory_space<vmem>>, vector<1x1x1x1xf32>
      %74 = vector.shape_cast %73 : vector<1x1x1x1xf32> to vector<1x1xf32>
      %75 = vector.shape_cast %72 : vector<1x1xf32> to vector<1x1x1x1xf32>
      tpu.vector_store %arg5[%c1_32, %c0_33, %c0_34, %c0_35], %75 {strides = array<i32>} : memref<3x3x1x1xf32, #tpu.memory_space<vmem>>, vector<1x1x1x1xf32>,
      %cst_36 = arith.constant dense<0x7F800000> : vector<8xf32>
      %76 = vector.multi_reduction <minimumf>, %51, %cst_36 [1] : vector<8x128xf32> to vector<8xf32>
      %77 = vector.shape_cast %76 : vector<8xf32> to vector<8x1xf32>
      %cst_37 = arith.constant dense<0x7F800000> : vector<1xf32>
      %78 = vector.multi_reduction <minimumf>, %77, %cst_37 [0] : vector<8x1xf32> to vector<1xf32>
      %79 = vector.shape_cast %78 : vector<1xf32> to vector<1x1xf32>
      %c0_i32_38 = arith.constant 0 : i32
      %80 = arith.cmpi eq, %arg1, %c0_i32_38 : i32
      %cst_39 = arith.constant 0x7F800000 : f32
      %81 = vector.broadcast %cst_39 : f32 to vector<1x1xf32>
      %c1_40 = arith.constant 1 : index
      %c1_41 = arith.constant 1 : index
      %c0_42 = arith.constant 0 : index
      %c0_43 = arith.constant 0 : index
      %82 = vector.load %arg5[%c1_40, %c1_41, %c0_42, %c0_43] : memref<3x3x1x1xf32, #tpu.memory_space<vmem>>, vector<1x1x1x1xf32>
      %83 = vector.shape_cast %82 : vector<1x1x1x1xf32> to vector<1x1xf32>
      %84 = arith.select %80, %81, %83 : vector<1x1xf32>
      %85 = arith.minimumf %84, %79 : vector<1x1xf32>
      %c1_44 = arith.constant 1 : index
      %c1_45 = arith.constant 1 : index
      %c0_46 = arith.constant 0 : index
      %c0_47 = arith.constant 0 : index
      %86 = vector.load %arg5[%c1_44, %c1_45, %c0_46, %c0_47] : memref<3x3x1x1xf32, #tpu.memory_space<vmem>>, vector<1x1x1x1xf32>
      %87 = vector.shape_cast %86 : vector<1x1x1x1xf32> to vector<1x1xf32>
      %88 = vector.shape_cast %85 : vector<1x1xf32> to vector<1x1x1x1xf32>
      tpu.vector_store %arg5[%c1_44, %c1_45, %c0_46, %c0_47], %88 {strides = array<i32>} : memref<3x3x1x1xf32, #tpu.memory_space<vmem>>, vector<1x1x1x1xf32>,
      %cst_48 = arith.constant dense<0x7F800000> : vector<8xf32>
      %89 = vector.multi_reduction <minimumf>, %62, %cst_48 [1] : vector<8x128xf32> to vector<8xf32>
      %90 = vector.shape_cast %89 : vector<8xf32> to vector<8x1xf32>
      %cst_49 = arith.constant dense<0x7F800000> : vector<1xf32>
      %91 = vector.multi_reduction <minimumf>, %90, %cst_49 [0] : vector<8x1xf32> to vector<1xf32>
      %92 = vector.shape_cast %91 : vector<1xf32> to vector<1x1xf32>
      %c0_i32_50 = arith.constant 0 : i32
      %93 = arith.cmpi eq, %arg1, %c0_i32_50 : i32
      %cst_51 = arith.constant 0x7F800000 : f32
      %94 = vector.broadcast %cst_51 : f32 to vector<1x1xf32>
      %c1_52 = arith.constant 1 : index
      %c2_53 = arith.constant 2 : index
      %c0_54 = arith.constant 0 : index
      %c0_55 = arith.constant 0 : index
      %95 = vector.load %arg5[%c1_52, %c2_53, %c0_54, %c0_55] : memref<3x3x1x1xf32, #tpu.memory_space<vmem>>, vector<1x1x1x1xf32>
      %96 = vector.shape_cast %95 : vector<1x1x1x1xf32> to vector<1x1xf32>
      %97 = arith.select %93, %94, %96 : vector<1x1xf32>
      %98 = arith.minimumf %97, %92 : vector<1x1xf32>
      %c1_56 = arith.constant 1 : index
      %c2_57 = arith.constant 2 : index
      %c0_58 = arith.constant 0 : index
      %c0_59 = arith.constant 0 : index
      %99 = vector.load %arg5[%c1_56, %c2_57, %c0_58, %c0_59] : memref<3x3x1x1xf32, #tpu.memory_space<vmem>>, vector<1x1x1x1xf32>
      %100 = vector.shape_cast %99 : vector<1x1x1x1xf32> to vector<1x1xf32>
      %101 = vector.shape_cast %98 : vector<1x1xf32> to vector<1x1x1x1xf32>
      tpu.vector_store %arg5[%c1_56, %c2_57, %c0_58, %c0_59], %101 {strides = array<i32>} : memref<3x3x1x1xf32, #tpu.memory_space<vmem>>, vector<1x1x1x1xf32>,
    } else {
    }
    %c2_i32 = arith.constant 2 : i32
    %6 = arith.cmpi eq, %arg0, %c2_i32 : i32
    %7 = arith.extui %6 : i1 to i32
    %c0_i32_2 = arith.constant 0 : i32
    %8 = arith.cmpi ne, %7, %c0_i32_2 : i32
    scf.if %8 {
      %c0 = arith.constant 0 : index
      %c0_4 = arith.constant 0 : index
      %c0_5 = arith.constant 0 : index
      %12 = vector.load %arg3[%c0, %c0_4, %c0_5] : memref<3x8x128xf32, #tpu.memory_space<vmem>>, vector<1x8x128xf32>
      %13 = vector.shape_cast %12 : vector<1x8x128xf32> to vector<8x128xf32>
      %c1 = arith.constant 1 : index
      %c0_6 = arith.constant 0 : index
      %c0_7 = arith.constant 0 : index
      %14 = vector.load %arg3[%c1, %c0_6, %c0_7] : memref<3x8x128xf32, #tpu.memory_space<vmem>>, vector<1x8x128xf32>
      %15 = vector.shape_cast %14 : vector<1x8x128xf32> to vector<8x128xf32>
      %c2 = arith.constant 2 : index
      %c0_8 = arith.constant 0 : index
      %c0_9 = arith.constant 0 : index
      %16 = vector.load %arg3[%c2, %c0_8, %c0_9] : memref<3x8x128xf32, #tpu.memory_space<vmem>>, vector<1x8x128xf32>
      %17 = vector.shape_cast %16 : vector<1x8x128xf32> to vector<8x128xf32>
      %c0_10 = arith.constant 0 : index
      %c0_11 = arith.constant 0 : index
      %c0_12 = arith.constant 0 : index
      %c0_13 = arith.constant 0 : index
      %18 = vector.load %arg5[%c0_10, %c0_11, %c0_12, %c0_13] : memref<3x3x1x1xf32, #tpu.memory_space<vmem>>, vector<1x1x1x1xf32>
      %19 = vector.shape_cast %18 : vector<1x1x1x1xf32> to vector<1x1xf32>
      %20 = vector.broadcast %19 : vector<1x1xf32> to vector<8x128xf32>
      %21 = arith.subf %13, %20 : vector<8x128xf32>
      %c0_14 = arith.constant 0 : index
      %c1_15 = arith.constant 1 : index
      %c0_16 = arith.constant 0 : index
      %c0_17 = arith.constant 0 : index
      %22 = vector.load %arg5[%c0_14, %c1_15, %c0_16, %c0_17] : memref<3x3x1x1xf32, #tpu.memory_space<vmem>>, vector<1x1x1x1xf32>
      %23 = vector.shape_cast %22 : vector<1x1x1x1xf32> to vector<1x1xf32>
      %24 = vector.broadcast %23 : vector<1x1xf32> to vector<8x128xf32>
      %25 = arith.subf %15, %24 : vector<8x128xf32>
      %c0_18 = arith.constant 0 : index
      %c2_19 = arith.constant 2 : index
      %c0_20 = arith.constant 0 : index
      %c0_21 = arith.constant 0 : index
      %26 = vector.load %arg5[%c0_18, %c2_19, %c0_20, %c0_21] : memref<3x3x1x1xf32, #tpu.memory_space<vmem>>, vector<1x1x1x1xf32>
      %27 = vector.shape_cast %26 : vector<1x1x1x1xf32> to vector<1x1xf32>
      %28 = vector.broadcast %27 : vector<1x1xf32> to vector<8x128xf32>
      %29 = arith.subf %17, %28 : vector<8x128xf32>
      %c0_22 = arith.constant 0 : index
      %30 = memref.load %arg2[%c0_22] : memref<18xf32, #tpu.memory_space<smem>>
      %31 = vector.broadcast %30 : f32 to vector<8x128xf32>
      %32 = arith.mulf %21, %31 : vector<8x128xf32>
      %c3 = arith.constant 3 : index
      %33 = memref.load %arg2[%c3] : memref<18xf32, #tpu.memory_space<smem>>
      %34 = vector.broadcast %33 : f32 to vector<8x128xf32>
      %35 = arith.mulf %25, %34 : vector<8x128xf32>
      %36 = arith.addf %32, %35 : vector<8x128xf32>
      %c6 = arith.constant 6 : index
      %37 = memref.load %arg2[%c6] : memref<18xf32, #tpu.memory_space<smem>>
      %38 = vector.broadcast %37 : f32 to vector<8x128xf32>
      %39 = arith.mulf %29, %38 : vector<8x128xf32>
      %40 = arith.addf %36, %39 : vector<8x128xf32>
      %c1_23 = arith.constant 1 : index
      %41 = memref.load %arg2[%c1_23] : memref<18xf32, #tpu.memory_space<smem>>
      %42 = vector.broadcast %41 : f32 to vector<8x128xf32>
      %43 = arith.mulf %21, %42 : vector<8x128xf32>
      %c4 = arith.constant 4 : index
      %44 = memref.load %arg2[%c4] : memref<18xf32, #tpu.memory_space<smem>>
      %45 = vector.broadcast %44 : f32 to vector<8x128xf32>
      %46 = arith.mulf %25, %45 : vector<8x128xf32>
      %47 = arith.addf %43, %46 : vector<8x128xf32>
      %c7 = arith.constant 7 : index
      %48 = memref.load %arg2[%c7] : memref<18xf32, #tpu.memory_space<smem>>
      %49 = vector.broadcast %48 : f32 to vector<8x128xf32>
      %50 = arith.mulf %29, %49 : vector<8x128xf32>
      %51 = arith.addf %47, %50 : vector<8x128xf32>
      %c2_24 = arith.constant 2 : index
      %52 = memref.load %arg2[%c2_24] : memref<18xf32, #tpu.memory_space<smem>>
      %53 = vector.broadcast %52 : f32 to vector<8x128xf32>
      %54 = arith.mulf %21, %53 : vector<8x128xf32>
      %c5 = arith.constant 5 : index
      %55 = memref.load %arg2[%c5] : memref<18xf32, #tpu.memory_space<smem>>
      %56 = vector.broadcast %55 : f32 to vector<8x128xf32>
      %57 = arith.mulf %25, %56 : vector<8x128xf32>
      %58 = arith.addf %54, %57 : vector<8x128xf32>
      %c8 = arith.constant 8 : index
      %59 = memref.load %arg2[%c8] : memref<18xf32, #tpu.memory_space<smem>>
      %60 = vector.broadcast %59 : f32 to vector<8x128xf32>
      %61 = arith.mulf %29, %60 : vector<8x128xf32>
      %62 = arith.addf %58, %61 : vector<8x128xf32>
      %c1_25 = arith.constant 1 : index
      %c0_26 = arith.constant 0 : index
      %c0_27 = arith.constant 0 : index
      %c0_28 = arith.constant 0 : index
      %63 = vector.load %arg5[%c1_25, %c0_26, %c0_27, %c0_28] : memref<3x3x1x1xf32, #tpu.memory_space<vmem>>, vector<1x1x1x1xf32>
      %64 = vector.shape_cast %63 : vector<1x1x1x1xf32> to vector<1x1xf32>
      %65 = vector.broadcast %64 : vector<1x1xf32> to vector<8x128xf32>
      %66 = arith.subf %40, %65 : vector<8x128xf32>
      %c1_29 = arith.constant 1 : index
      %c1_30 = arith.constant 1 : index
      %c0_31 = arith.constant 0 : index
      %c0_32 = arith.constant 0 : index
      %67 = vector.load %arg5[%c1_29, %c1_30, %c0_31, %c0_32] : memref<3x3x1x1xf32, #tpu.memory_space<vmem>>, vector<1x1x1x1xf32>
      %68 = vector.shape_cast %67 : vector<1x1x1x1xf32> to vector<1x1xf32>
      %69 = vector.broadcast %68 : vector<1x1xf32> to vector<8x128xf32>
      %70 = arith.subf %51, %69 : vector<8x128xf32>
      %c1_33 = arith.constant 1 : index
      %c2_34 = arith.constant 2 : index
      %c0_35 = arith.constant 0 : index
      %c0_36 = arith.constant 0 : index
      %71 = vector.load %arg5[%c1_33, %c2_34, %c0_35, %c0_36] : memref<3x3x1x1xf32, #tpu.memory_space<vmem>>, vector<1x1x1x1xf32>
      %72 = vector.shape_cast %71 : vector<1x1x1x1xf32> to vector<1x1xf32>
      %73 = vector.broadcast %72 : vector<1x1xf32> to vector<8x128xf32>
      %74 = arith.subf %62, %73 : vector<8x128xf32>
      %75 = math.roundeven %66 : vector<8x128xf32>
      %76 = math.roundeven %70 : vector<8x128xf32>
      %77 = math.roundeven %74 : vector<8x128xf32>
      %c9 = arith.constant 9 : index
      %78 = memref.load %arg2[%c9] : memref<18xf32, #tpu.memory_space<smem>>
      %79 = vector.broadcast %78 : f32 to vector<8x128xf32>
      %80 = arith.mulf %75, %79 : vector<8x128xf32>
      %c12 = arith.constant 12 : index
      %81 = memref.load %arg2[%c12] : memref<18xf32, #tpu.memory_space<smem>>
      %82 = vector.broadcast %81 : f32 to vector<8x128xf32>
      %83 = arith.mulf %76, %82 : vector<8x128xf32>
      %84 = arith.addf %80, %83 : vector<8x128xf32>
      %c15 = arith.constant 15 : index
      %85 = memref.load %arg2[%c15] : memref<18xf32, #tpu.memory_space<smem>>
      %86 = vector.broadcast %85 : f32 to vector<8x128xf32>
      %87 = arith.mulf %77, %86 : vector<8x128xf32>
      %88 = arith.addf %84, %87 : vector<8x128xf32>
      %c10 = arith.constant 10 : index
      %89 = memref.load %arg2[%c10] : memref<18xf32, #tpu.memory_space<smem>>
      %90 = vector.broadcast %89 : f32 to vector<8x128xf32>
      %91 = arith.mulf %75, %90 : vector<8x128xf32>
      %c13 = arith.constant 13 : index
      %92 = memref.load %arg2[%c13] : memref<18xf32, #tpu.memory_space<smem>>
      %93 = vector.broadcast %92 : f32 to vector<8x128xf32>
      %94 = arith.mulf %76, %93 : vector<8x128xf32>
      %95 = arith.addf %91, %94 : vector<8x128xf32>
      %c16 = arith.constant 16 : index
      %96 = memref.load %arg2[%c16] : memref<18xf32, #tpu.memory_space<smem>>
      %97 = vector.broadcast %96 : f32 to vector<8x128xf32>
      %98 = arith.mulf %77, %97 : vector<8x128xf32>
      %99 = arith.addf %95, %98 : vector<8x128xf32>
      %c11 = arith.constant 11 : index
      %100 = memref.load %arg2[%c11] : memref<18xf32, #tpu.memory_space<smem>>
      %101 = vector.broadcast %100 : f32 to vector<8x128xf32>
      %102 = arith.mulf %75, %101 : vector<8x128xf32>
      %c14 = arith.constant 14 : index
      %103 = memref.load %arg2[%c14] : memref<18xf32, #tpu.memory_space<smem>>
      %104 = vector.broadcast %103 : f32 to vector<8x128xf32>
      %105 = arith.mulf %76, %104 : vector<8x128xf32>
      %106 = arith.addf %102, %105 : vector<8x128xf32>
      %c17 = arith.constant 17 : index
      %107 = memref.load %arg2[%c17] : memref<18xf32, #tpu.memory_space<smem>>
      %108 = vector.broadcast %107 : f32 to vector<8x128xf32>
      %109 = arith.mulf %77, %108 : vector<8x128xf32>
      %110 = arith.addf %106, %109 : vector<8x128xf32>
      %cst = arith.constant dense<0x7F800000> : vector<8xf32>
      %111 = vector.multi_reduction <minimumf>, %88, %cst [1] : vector<8x128xf32> to vector<8xf32>
      %112 = vector.shape_cast %111 : vector<8xf32> to vector<8x1xf32>
      %cst_37 = arith.constant dense<0x7F800000> : vector<1xf32>
      %113 = vector.multi_reduction <minimumf>, %112, %cst_37 [0] : vector<8x1xf32> to vector<1xf32>
      %114 = vector.shape_cast %113 : vector<1xf32> to vector<1x1xf32>
      %c0_i32_38 = arith.constant 0 : i32
      %115 = arith.cmpi eq, %arg1, %c0_i32_38 : i32
      %cst_39 = arith.constant 0x7F800000 : f32
      %116 = vector.broadcast %cst_39 : f32 to vector<1x1xf32>
      %c2_40 = arith.constant 2 : index
      %c0_41 = arith.constant 0 : index
      %c0_42 = arith.constant 0 : index
      %c0_43 = arith.constant 0 : index
      %117 = vector.load %arg5[%c2_40, %c0_41, %c0_42, %c0_43] : memref<3x3x1x1xf32, #tpu.memory_space<vmem>>, vector<1x1x1x1xf32>
      %118 = vector.shape_cast %117 : vector<1x1x1x1xf32> to vector<1x1xf32>
      %119 = arith.select %115, %116, %118 : vector<1x1xf32>
      %120 = arith.minimumf %119, %114 : vector<1x1xf32>
      %c2_44 = arith.constant 2 : index
      %c0_45 = arith.constant 0 : index
      %c0_46 = arith.constant 0 : index
      %c0_47 = arith.constant 0 : index
      %121 = vector.load %arg5[%c2_44, %c0_45, %c0_46, %c0_47] : memref<3x3x1x1xf32, #tpu.memory_space<vmem>>, vector<1x1x1x1xf32>
      %122 = vector.shape_cast %121 : vector<1x1x1x1xf32> to vector<1x1xf32>
      %123 = vector.shape_cast %120 : vector<1x1xf32> to vector<1x1x1x1xf32>
      tpu.vector_store %arg5[%c2_44, %c0_45, %c0_46, %c0_47], %123 {strides = array<i32>} : memref<3x3x1x1xf32, #tpu.memory_space<vmem>>, vector<1x1x1x1xf32>,
      %cst_48 = arith.constant dense<0x7F800000> : vector<8xf32>
      %124 = vector.multi_reduction <minimumf>, %99, %cst_48 [1] : vector<8x128xf32> to vector<8xf32>
      %125 = vector.shape_cast %124 : vector<8xf32> to vector<8x1xf32>
      %cst_49 = arith.constant dense<0x7F800000> : vector<1xf32>
      %126 = vector.multi_reduction <minimumf>, %125, %cst_49 [0] : vector<8x1xf32> to vector<1xf32>
      %127 = vector.shape_cast %126 : vector<1xf32> to vector<1x1xf32>
      %c0_i32_50 = arith.constant 0 : i32
      %128 = arith.cmpi eq, %arg1, %c0_i32_50 : i32
      %cst_51 = arith.constant 0x7F800000 : f32
      %129 = vector.broadcast %cst_51 : f32 to vector<1x1xf32>
      %c2_52 = arith.constant 2 : index
      %c1_53 = arith.constant 1 : index
      %c0_54 = arith.constant 0 : index
      %c0_55 = arith.constant 0 : index
      %130 = vector.load %arg5[%c2_52, %c1_53, %c0_54, %c0_55] : memref<3x3x1x1xf32, #tpu.memory_space<vmem>>, vector<1x1x1x1xf32>
      %131 = vector.shape_cast %130 : vector<1x1x1x1xf32> to vector<1x1xf32>
      %132 = arith.select %128, %129, %131 : vector<1x1xf32>
      %133 = arith.minimumf %132, %127 : vector<1x1xf32>
      %c2_56 = arith.constant 2 : index
      %c1_57 = arith.constant 1 : index
      %c0_58 = arith.constant 0 : index
      %c0_59 = arith.constant 0 : index
      %134 = vector.load %arg5[%c2_56, %c1_57, %c0_58, %c0_59] : memref<3x3x1x1xf32, #tpu.memory_space<vmem>>, vector<1x1x1x1xf32>
      %135 = vector.shape_cast %134 : vector<1x1x1x1xf32> to vector<1x1xf32>
      %136 = vector.shape_cast %133 : vector<1x1xf32> to vector<1x1x1x1xf32>
      tpu.vector_store %arg5[%c2_56, %c1_57, %c0_58, %c0_59], %136 {strides = array<i32>} : memref<3x3x1x1xf32, #tpu.memory_space<vmem>>, vector<1x1x1x1xf32>,
      %cst_60 = arith.constant dense<0x7F800000> : vector<8xf32>
      %137 = vector.multi_reduction <minimumf>, %110, %cst_60 [1] : vector<8x128xf32> to vector<8xf32>
      %138 = vector.shape_cast %137 : vector<8xf32> to vector<8x1xf32>
      %cst_61 = arith.constant dense<0x7F800000> : vector<1xf32>
      %139 = vector.multi_reduction <minimumf>, %138, %cst_61 [0] : vector<8x1xf32> to vector<1xf32>
      %140 = vector.shape_cast %139 : vector<1xf32> to vector<1x1xf32>
      %c0_i32_62 = arith.constant 0 : i32
      %141 = arith.cmpi eq, %arg1, %c0_i32_62 : i32
      %cst_63 = arith.constant 0x7F800000 : f32
      %142 = vector.broadcast %cst_63 : f32 to vector<1x1xf32>
      %c2_64 = arith.constant 2 : index
      %c2_65 = arith.constant 2 : index
      %c0_66 = arith.constant 0 : index
      %c0_67 = arith.constant 0 : index
      %143 = vector.load %arg5[%c2_64, %c2_65, %c0_66, %c0_67] : memref<3x3x1x1xf32, #tpu.memory_space<vmem>>, vector<1x1x1x1xf32>
      %144 = vector.shape_cast %143 : vector<1x1x1x1xf32> to vector<1x1xf32>
      %145 = arith.select %141, %142, %144 : vector<1x1xf32>
      %146 = arith.minimumf %145, %140 : vector<1x1xf32>
      %c2_68 = arith.constant 2 : index
      %c2_69 = arith.constant 2 : index
      %c0_70 = arith.constant 0 : index
      %c0_71 = arith.constant 0 : index
      %147 = vector.load %arg5[%c2_68, %c2_69, %c0_70, %c0_71] : memref<3x3x1x1xf32, #tpu.memory_space<vmem>>, vector<1x1x1x1xf32>
      %148 = vector.shape_cast %147 : vector<1x1x1x1xf32> to vector<1x1xf32>
      %149 = vector.shape_cast %146 : vector<1x1xf32> to vector<1x1x1x1xf32>
      tpu.vector_store %arg5[%c2_68, %c2_69, %c0_70, %c0_71], %149 {strides = array<i32>} : memref<3x3x1x1xf32, #tpu.memory_space<vmem>>, vector<1x1x1x1xf32>,
    } else {
    }
    %c3_i32 = arith.constant 3 : i32
    %9 = arith.cmpi eq, %arg0, %c3_i32 : i32
    %10 = arith.extui %9 : i1 to i32
    %c0_i32_3 = arith.constant 0 : i32
    %11 = arith.cmpi ne, %10, %c0_i32_3 : i32
    scf.if %11 {
      %c0 = arith.constant 0 : index
      %c0_4 = arith.constant 0 : index
      %c0_5 = arith.constant 0 : index
      %12 = vector.load %arg3[%c0, %c0_4, %c0_5] : memref<3x8x128xf32, #tpu.memory_space<vmem>>, vector<1x8x128xf32>
      %13 = vector.shape_cast %12 : vector<1x8x128xf32> to vector<8x128xf32>
      %c1 = arith.constant 1 : index
      %c0_6 = arith.constant 0 : index
      %c0_7 = arith.constant 0 : index
      %14 = vector.load %arg3[%c1, %c0_6, %c0_7] : memref<3x8x128xf32, #tpu.memory_space<vmem>>, vector<1x8x128xf32>
      %15 = vector.shape_cast %14 : vector<1x8x128xf32> to vector<8x128xf32>
      %c2 = arith.constant 2 : index
      %c0_8 = arith.constant 0 : index
      %c0_9 = arith.constant 0 : index
      %16 = vector.load %arg3[%c2, %c0_8, %c0_9] : memref<3x8x128xf32, #tpu.memory_space<vmem>>, vector<1x8x128xf32>
      %17 = vector.shape_cast %16 : vector<1x8x128xf32> to vector<8x128xf32>
      %c0_10 = arith.constant 0 : index
      %c0_11 = arith.constant 0 : index
      %c0_12 = arith.constant 0 : index
      %c0_13 = arith.constant 0 : index
      %18 = vector.load %arg5[%c0_10, %c0_11, %c0_12, %c0_13] : memref<3x3x1x1xf32, #tpu.memory_space<vmem>>, vector<1x1x1x1xf32>
      %19 = vector.shape_cast %18 : vector<1x1x1x1xf32> to vector<1x1xf32>
      %20 = vector.broadcast %19 : vector<1x1xf32> to vector<8x128xf32>
      %21 = arith.subf %13, %20 : vector<8x128xf32>
      %c0_14 = arith.constant 0 : index
      %c1_15 = arith.constant 1 : index
      %c0_16 = arith.constant 0 : index
      %c0_17 = arith.constant 0 : index
      %22 = vector.load %arg5[%c0_14, %c1_15, %c0_16, %c0_17] : memref<3x3x1x1xf32, #tpu.memory_space<vmem>>, vector<1x1x1x1xf32>
      %23 = vector.shape_cast %22 : vector<1x1x1x1xf32> to vector<1x1xf32>
      %24 = vector.broadcast %23 : vector<1x1xf32> to vector<8x128xf32>
      %25 = arith.subf %15, %24 : vector<8x128xf32>
      %c0_18 = arith.constant 0 : index
      %c2_19 = arith.constant 2 : index
      %c0_20 = arith.constant 0 : index
      %c0_21 = arith.constant 0 : index
      %26 = vector.load %arg5[%c0_18, %c2_19, %c0_20, %c0_21] : memref<3x3x1x1xf32, #tpu.memory_space<vmem>>, vector<1x1x1x1xf32>
      %27 = vector.shape_cast %26 : vector<1x1x1x1xf32> to vector<1x1xf32>
      %28 = vector.broadcast %27 : vector<1x1xf32> to vector<8x128xf32>
      %29 = arith.subf %17, %28 : vector<8x128xf32>
      %c0_22 = arith.constant 0 : index
      %30 = memref.load %arg2[%c0_22] : memref<18xf32, #tpu.memory_space<smem>>
      %31 = vector.broadcast %30 : f32 to vector<8x128xf32>
      %32 = arith.mulf %21, %31 : vector<8x128xf32>
      %c3 = arith.constant 3 : index
      %33 = memref.load %arg2[%c3] : memref<18xf32, #tpu.memory_space<smem>>
      %34 = vector.broadcast %33 : f32 to vector<8x128xf32>
      %35 = arith.mulf %25, %34 : vector<8x128xf32>
      %36 = arith.addf %32, %35 : vector<8x128xf32>
      %c6 = arith.constant 6 : index
      %37 = memref.load %arg2[%c6] : memref<18xf32, #tpu.memory_space<smem>>
      %38 = vector.broadcast %37 : f32 to vector<8x128xf32>
      %39 = arith.mulf %29, %38 : vector<8x128xf32>
      %40 = arith.addf %36, %39 : vector<8x128xf32>
      %c1_23 = arith.constant 1 : index
      %41 = memref.load %arg2[%c1_23] : memref<18xf32, #tpu.memory_space<smem>>
      %42 = vector.broadcast %41 : f32 to vector<8x128xf32>
      %43 = arith.mulf %21, %42 : vector<8x128xf32>
      %c4 = arith.constant 4 : index
      %44 = memref.load %arg2[%c4] : memref<18xf32, #tpu.memory_space<smem>>
      %45 = vector.broadcast %44 : f32 to vector<8x128xf32>
      %46 = arith.mulf %25, %45 : vector<8x128xf32>
      %47 = arith.addf %43, %46 : vector<8x128xf32>
      %c7 = arith.constant 7 : index
      %48 = memref.load %arg2[%c7] : memref<18xf32, #tpu.memory_space<smem>>
      %49 = vector.broadcast %48 : f32 to vector<8x128xf32>
      %50 = arith.mulf %29, %49 : vector<8x128xf32>
      %51 = arith.addf %47, %50 : vector<8x128xf32>
      %c2_24 = arith.constant 2 : index
      %52 = memref.load %arg2[%c2_24] : memref<18xf32, #tpu.memory_space<smem>>
      %53 = vector.broadcast %52 : f32 to vector<8x128xf32>
      %54 = arith.mulf %21, %53 : vector<8x128xf32>
      %c5 = arith.constant 5 : index
      %55 = memref.load %arg2[%c5] : memref<18xf32, #tpu.memory_space<smem>>
      %56 = vector.broadcast %55 : f32 to vector<8x128xf32>
      %57 = arith.mulf %25, %56 : vector<8x128xf32>
      %58 = arith.addf %54, %57 : vector<8x128xf32>
      %c8 = arith.constant 8 : index
      %59 = memref.load %arg2[%c8] : memref<18xf32, #tpu.memory_space<smem>>
      %60 = vector.broadcast %59 : f32 to vector<8x128xf32>
      %61 = arith.mulf %29, %60 : vector<8x128xf32>
      %62 = arith.addf %58, %61 : vector<8x128xf32>
      %c1_25 = arith.constant 1 : index
      %c0_26 = arith.constant 0 : index
      %c0_27 = arith.constant 0 : index
      %c0_28 = arith.constant 0 : index
      %63 = vector.load %arg5[%c1_25, %c0_26, %c0_27, %c0_28] : memref<3x3x1x1xf32, #tpu.memory_space<vmem>>, vector<1x1x1x1xf32>
      %64 = vector.shape_cast %63 : vector<1x1x1x1xf32> to vector<1x1xf32>
      %65 = vector.broadcast %64 : vector<1x1xf32> to vector<8x128xf32>
      %66 = arith.subf %40, %65 : vector<8x128xf32>
      %c1_29 = arith.constant 1 : index
      %c1_30 = arith.constant 1 : index
      %c0_31 = arith.constant 0 : index
      %c0_32 = arith.constant 0 : index
      %67 = vector.load %arg5[%c1_29, %c1_30, %c0_31, %c0_32] : memref<3x3x1x1xf32, #tpu.memory_space<vmem>>, vector<1x1x1x1xf32>
      %68 = vector.shape_cast %67 : vector<1x1x1x1xf32> to vector<1x1xf32>
      %69 = vector.broadcast %68 : vector<1x1xf32> to vector<8x128xf32>
      %70 = arith.subf %51, %69 : vector<8x128xf32>
      %c1_33 = arith.constant 1 : index
      %c2_34 = arith.constant 2 : index
      %c0_35 = arith.constant 0 : index
      %c0_36 = arith.constant 0 : index
      %71 = vector.load %arg5[%c1_33, %c2_34, %c0_35, %c0_36] : memref<3x3x1x1xf32, #tpu.memory_space<vmem>>, vector<1x1x1x1xf32>
      %72 = vector.shape_cast %71 : vector<1x1x1x1xf32> to vector<1x1xf32>
      %73 = vector.broadcast %72 : vector<1x1xf32> to vector<8x128xf32>
      %74 = arith.subf %62, %73 : vector<8x128xf32>
      %75 = math.roundeven %66 : vector<8x128xf32>
      %76 = math.roundeven %70 : vector<8x128xf32>
      %77 = math.roundeven %74 : vector<8x128xf32>
      %c9 = arith.constant 9 : index
      %78 = memref.load %arg2[%c9] : memref<18xf32, #tpu.memory_space<smem>>
      %79 = vector.broadcast %78 : f32 to vector<8x128xf32>
      %80 = arith.mulf %75, %79 : vector<8x128xf32>
      %c12 = arith.constant 12 : index
      %81 = memref.load %arg2[%c12] : memref<18xf32, #tpu.memory_space<smem>>
      %82 = vector.broadcast %81 : f32 to vector<8x128xf32>
      %83 = arith.mulf %76, %82 : vector<8x128xf32>
      %84 = arith.addf %80, %83 : vector<8x128xf32>
      %c15 = arith.constant 15 : index
      %85 = memref.load %arg2[%c15] : memref<18xf32, #tpu.memory_space<smem>>
      %86 = vector.broadcast %85 : f32 to vector<8x128xf32>
      %87 = arith.mulf %77, %86 : vector<8x128xf32>
      %88 = arith.addf %84, %87 : vector<8x128xf32>
      %c10 = arith.constant 10 : index
      %89 = memref.load %arg2[%c10] : memref<18xf32, #tpu.memory_space<smem>>
      %90 = vector.broadcast %89 : f32 to vector<8x128xf32>
      %91 = arith.mulf %75, %90 : vector<8x128xf32>
      %c13 = arith.constant 13 : index
      %92 = memref.load %arg2[%c13] : memref<18xf32, #tpu.memory_space<smem>>
      %93 = vector.broadcast %92 : f32 to vector<8x128xf32>
      %94 = arith.mulf %76, %93 : vector<8x128xf32>
      %95 = arith.addf %91, %94 : vector<8x128xf32>
      %c16 = arith.constant 16 : index
      %96 = memref.load %arg2[%c16] : memref<18xf32, #tpu.memory_space<smem>>
      %97 = vector.broadcast %96 : f32 to vector<8x128xf32>
      %98 = arith.mulf %77, %97 : vector<8x128xf32>
      %99 = arith.addf %95, %98 : vector<8x128xf32>
      %c11 = arith.constant 11 : index
      %100 = memref.load %arg2[%c11] : memref<18xf32, #tpu.memory_space<smem>>
      %101 = vector.broadcast %100 : f32 to vector<8x128xf32>
      %102 = arith.mulf %75, %101 : vector<8x128xf32>
      %c14 = arith.constant 14 : index
      %103 = memref.load %arg2[%c14] : memref<18xf32, #tpu.memory_space<smem>>
      %104 = vector.broadcast %103 : f32 to vector<8x128xf32>
      %105 = arith.mulf %76, %104 : vector<8x128xf32>
      %106 = arith.addf %102, %105 : vector<8x128xf32>
      %c17 = arith.constant 17 : index
      %107 = memref.load %arg2[%c17] : memref<18xf32, #tpu.memory_space<smem>>
      %108 = vector.broadcast %107 : f32 to vector<8x128xf32>
      %109 = arith.mulf %77, %108 : vector<8x128xf32>
      %110 = arith.addf %106, %109 : vector<8x128xf32>
      %c2_37 = arith.constant 2 : index
      %c0_38 = arith.constant 0 : index
      %c0_39 = arith.constant 0 : index
      %c0_40 = arith.constant 0 : index
      %111 = vector.load %arg5[%c2_37, %c0_38, %c0_39, %c0_40] : memref<3x3x1x1xf32, #tpu.memory_space<vmem>>, vector<1x1x1x1xf32>
      %112 = vector.shape_cast %111 : vector<1x1x1x1xf32> to vector<1x1xf32>
      %113 = vector.broadcast %112 : vector<1x1xf32> to vector<8x128xf32>
      %114 = arith.subf %88, %113 : vector<8x128xf32>
      %c2_41 = arith.constant 2 : index
      %c1_42 = arith.constant 1 : index
      %c0_43 = arith.constant 0 : index
      %c0_44 = arith.constant 0 : index
      %115 = vector.load %arg5[%c2_41, %c1_42, %c0_43, %c0_44] : memref<3x3x1x1xf32, #tpu.memory_space<vmem>>, vector<1x1x1x1xf32>
      %116 = vector.shape_cast %115 : vector<1x1x1x1xf32> to vector<1x1xf32>
      %117 = vector.broadcast %116 : vector<1x1xf32> to vector<8x128xf32>
      %118 = arith.subf %99, %117 : vector<8x128xf32>
      %c2_45 = arith.constant 2 : index
      %c2_46 = arith.constant 2 : index
      %c0_47 = arith.constant 0 : index
      %c0_48 = arith.constant 0 : index
      %119 = vector.load %arg5[%c2_45, %c2_46, %c0_47, %c0_48] : memref<3x3x1x1xf32, #tpu.memory_space<vmem>>, vector<1x1x1x1xf32>
      %120 = vector.shape_cast %119 : vector<1x1x1x1xf32> to vector<1x1xf32>
      %121 = vector.broadcast %120 : vector<1x1xf32> to vector<8x128xf32>
      %122 = arith.subf %110, %121 : vector<8x128xf32>
      %123 = math.roundeven %114 : vector<8x128xf32>
      %124 = math.roundeven %118 : vector<8x128xf32>
      %125 = math.roundeven %122 : vector<8x128xf32>
      %c0_49 = arith.constant 0 : index
      %c0_50 = arith.constant 0 : index
      %c0_51 = arith.constant 0 : index
      %126 = vector.load %arg4[%c0_49, %c0_50, %c0_51] : memref<3x8x128xf32, #tpu.memory_space<vmem>>, vector<1x8x128xf32>
      %127 = vector.shape_cast %126 : vector<1x8x128xf32> to vector<8x128xf32>
      %128 = vector.shape_cast %123 : vector<8x128xf32> to vector<1x8x128xf32>
      tpu.vector_store %arg4[%c0_49, %c0_50, %c0_51], %128 {strides = array<i32>} : memref<3x8x128xf32, #tpu.memory_space<vmem>>, vector<1x8x128xf32>,
      %c1_52 = arith.constant 1 : index
      %c0_53 = arith.constant 0 : index
      %c0_54 = arith.constant 0 : index
      %129 = vector.load %arg4[%c1_52, %c0_53, %c0_54] : memref<3x8x128xf32, #tpu.memory_space<vmem>>, vector<1x8x128xf32>
      %130 = vector.shape_cast %129 : vector<1x8x128xf32> to vector<8x128xf32>
      %131 = vector.shape_cast %124 : vector<8x128xf32> to vector<1x8x128xf32>
      tpu.vector_store %arg4[%c1_52, %c0_53, %c0_54], %131 {strides = array<i32>} : memref<3x8x128xf32, #tpu.memory_space<vmem>>, vector<1x8x128xf32>,
      %c2_55 = arith.constant 2 : index
      %c0_56 = arith.constant 0 : index
      %c0_57 = arith.constant 0 : index
      %132 = vector.load %arg4[%c2_55, %c0_56, %c0_57] : memref<3x8x128xf32, #tpu.memory_space<vmem>>, vector<1x8x128xf32>
      %133 = vector.shape_cast %132 : vector<1x8x128xf32> to vector<8x128xf32>
      %134 = vector.shape_cast %125 : vector<8x128xf32> to vector<1x8x128xf32>
      tpu.vector_store %arg4[%c2_55, %c0_56, %c0_57], %134 {strides = array<i32>} : memref<3x8x128xf32, #tpu.memory_space<vmem>>, vector<1x8x128xf32>,
    } else {
    }
    return
  }
  func.func @transform_0(%arg0: i32, %arg1: i32) -> i32 {
    %c0_i32 = arith.constant 0 : i32
    %c0_i32_0 = arith.constant 0 : i32
    return %c0_i32 : i32
  }
  func.func @transform_1(%arg0: i32, %arg1: i32) -> (i32, i32, i32) {
    %c0_i32 = arith.constant 0 : i32
    %c0_i32_0 = arith.constant 0 : i32
    %c0_i32_1 = arith.constant 0 : i32
    return %c0_i32, %arg1, %c0_i32_0 : i32, i32, i32
  }
  func.func @transform_2(%arg0: i32, %arg1: i32) -> (i32, i32, i32) {
    %c0_i32 = arith.constant 0 : i32
    %c0_i32_0 = arith.constant 0 : i32
    %c0_i32_1 = arith.constant 0 : i32
    return %c0_i32, %arg1, %c0_i32_0 : i32, i32, i32
  }
}

</mosaic_0001>

<llo_original>
// kernel: _rotate_planes.1
$region0: #{_rotate_planes.1}
  #allocation0 [shape = 'u32[]', space=smem, size = 0x4, offset = 0x4, fixed_abs, tag = 'smem constant byte address 0x4 - core index']
  #allocation1 [shape = 'u32[144,128]{1,0:T(1,128)}', space=vmem, size = 0x12000, scoped, tag = 'internal scratch']
  #allocation2 [shape = 'f32[3,3,1,1]{3,2,1,0:T(1,128)}', space=vmem, size = 0x1200, scoped, tag = 'scratch operand']
  %s0 = inlined_call_operand.vmem [shape: f32[18], index: 0, kind: input, shape index: {}]
  %s1 = inlined_call_operand.hbm [shape: f32[3,8,128], index: 1, kind: input, shape index: {}, may-alias: {1,2}]
  %s2 = inlined_call_operand.hbm [shape: f32[3,8,128], index: 2, kind: output, shape index: {}, may-alias: {1,2}]
  %s3 = sld [smem:[#allocation0]]
  $region65: #{_rotate_planes.1} parent=0
    _
  %s5 = ssub.s32 1, %s3
  %s6 = scalar_select 0, %s5, %s3
  $region1: #{_rotate_planes.1} parent=0
    #allocation3 [shape = 'u8[512]{0}', space=smem, size = 0x200, scoped, tag = 'input window, operand 0, single buffered']
    #allocation4 [shape = 's32[2]{0}', space=sflag, size = 0x8, scoped, tag = 'scoped memory for _rotate_planes.1']
    #allocation5 [shape = 's32[2]{0}', space=sflag, size = 0x8, scoped, tag = 'scoped memory for _rotate_planes.1']
    #allocation6 [shape = 's32[2]{0}', space=sflag, size = 0x8, scoped, tag = 'scoped memory for _rotate_planes.1']
    #allocation7 [shape = 'u8[12288]{0}', space=vmem, size = 0x3000, scoped, tag = 'input window, operand 1, single buffered']
    #allocation8 [shape = 'u8[12288]{0}', space=vmem, size = 0x3000, scoped, tag = 'output window, operand 0, single buffered']
    %7 = vsyncpa [#allocation6], 0
    %8 = vsyncpa [#allocation4], 0
    %9 = vsyncpa [#allocation5], 0
    loop: start=0, step=1, limit=6
    $region2: #{_rotate_planes.1} parent=1 // loop_pre_header
      _
    $region3: #{_rotate_planes.1} parent=1 // loop_header
      %s11 = sphi 0, %s15
      %p12 = scmp.ge.s32.totalorder %s11, 6
      %s18 = sphi 0, %s30
      %s19 = sphi 0, %s26
      %s20 = sphi 0, %s18
      %s21 = sphi 0, %s19
      %s22 = sphi 0, %s20
      %s23 = sphi 0, %s21
      %s31 = sphi 0, %s31
      %s33 = sphi 0, %s31
      %s34 = sphi 0, %s33
      %s48 = sphi 0, %s34
      %s54 = sphi 0, %s56
      %s57 = sphi 0, %s54
      %s58 = sphi 0, %s57
      %s74 = sphi 0, %s58
      %s80 = sphi 0, %s82
      %s83 = sphi 0, %s80
      %s84 = sphi 0, %s83
      %s100 = sphi 0, %s84
    $region4: #{_rotate_planes.1} parent=1 // loop_header_branch
      %14 = sbr.rel (%p12) target = $region8
    $region5: #{_rotate_planes.1} parent=1 // loop_body
      %s16 = ssub.s32 %s11, 1
      %s17 = ssub.s32 %s11, 2
      %s24 = sadd.s32 1, %s19
      %p25 = scmp.ge.s32.totalorder %s24, 1
      %s26 = scalar_select %p25, 0, %s24
      %s27 = sadd.s32 1, %s18
      %s28 = scalar_select %p25, %s27, %s18
      %p29 = scmp.ge.s32.totalorder %s28, 4
      %s30 = scalar_select %p29, 0, %s28
      %s32 = sadd.s32 %s31, 1
      %p35 = scmp.eq.s32.totalorder %s11, 3
      %p36 = scmp.ne.s32.totalorder %s31, %s33
      %p37 = scmp.eq.s32.totalorder %s11, 0
      %p38 = por %p36, %p37
      %p39 = scmp.ne.s32.totalorder %s31, %s33
      %p40 = scmp.eq.s32.totalorder %s16, 3
      %p41 = por %p39, %p40
      %p42 = scmp.ne.s32.totalorder %s33, %s34
      %p43 = scmp.eq.s32.totalorder %s16, 0
      %p44 = por %p42, %p43
      %p45 = scmp.ne.s32.totalorder %s33, %s34
      %p46 = scmp.eq.s32.totalorder %s17, 3
      %p47 = por %p45, %p46
      %p49 = scmp.ne.s32.totalorder %s34, %s48
      %p50 = scmp.eq.s32.totalorder %s17, 0
      %p51 = por %p49, %p50
      %s52 = ssub.s32 %s19, %s26
      %p53 = scmp.eq.s32.totalorder %s52, 0
      %s55 = sadd.s32 %s54, 1
      %s56 = scalar_select %p53, %s54, %s55
      %p59 = pneg %p53
      %p60 = scmp.eq.s32.totalorder %s11, 3
      %p61 = por %p59, %p60
      %p62 = scmp.ne.s32.totalorder %s54, %s57
      %p63 = scmp.eq.s32.totalorder %s11, 0
      %p64 = por %p62, %p63
      %p65 = scmp.ne.s32.totalorder %s54, %s57
      %p66 = scmp.eq.s32.totalorder %s16, 3
      %p67 = por %p65, %p66
      %p68 = scmp.ne.s32.totalorder %s57, %s58
      %p69 = scmp.eq.s32.totalorder %s16, 0
      %p70 = por %p68, %p69
      %p71 = scmp.ne.s32.totalorder %s57, %s58
      %p72 = scmp.eq.s32.totalorder %s17, 3
      %p73 = por %p71, %p72
      %p75 = scmp.ne.s32.totalorder %s58, %s74
      %p76 = scmp.eq.s32.totalorder %s17, 0
      %p77 = por %p75, %p76
      %s78 = ssub.s32 %s19, %s26
      %p79 = scmp.eq.s32.totalorder %s78, 0
      %s81 = sadd.s32 %s80, 1
      %s82 = scalar_select %p79, %s80, %s81
      %p85 = pneg %p79
      %p86 = scmp.eq.s32.totalorder %s11, 3
      %p87 = por %p85, %p86
      %p88 = scmp.ne.s32.totalorder %s80, %s83
      %p89 = scmp.eq.s32.totalorder %s11, 0
      %p90 = por %p88, %p89
      %p91 = scmp.ne.s32.totalorder %s80, %s83
      %p92 = scmp.eq.s32.totalorder %s16, 3
      %p93 = por %p91, %p92
      %p94 = scmp.ne.s32.totalorder %s83, %s84
      %p95 = scmp.eq.s32.totalorder %s16, 0
      %p96 = por %p94, %p95
      %p97 = scmp.ne.s32.totalorder %s83, %s84
      %p98 = scmp.eq.s32.totalorder %s17, 3
      %p99 = por %p97, %p98
      %p101 = scmp.ne.s32.totalorder %s84, %s100
      %p102 = scmp.eq.s32.totalorder %s17, 0
      %p103 = por %p101, %p102
      %p104 = scmp.le.s32.totalorder 1, %s11
      %p105 = scmp.lt.s32.totalorder %s11, 5
      %p106 = pnand %p104, %p105
      %p107 = pneg %p106
      // Predicated region
      $region9: #{_rotate_planes.1} parent=5 // pred_check
        _
      $region10: #{_rotate_planes.1} parent=5 // pred_check_branch
        %109 = sbr.rel (%p106) target = $region12
      $region11: #{_rotate_planes.1} parent=5 // pred_region
        %s110 = ssub.s32 %s11, 1
        // Predicated region
        $region13: #{_rotate_planes.1} parent=11 // pred_check
          %p111 = pneg %p44
        $region14: #{_rotate_planes.1} parent=11 // pred_check_branch
          %113 = sbr.rel (%p111) target = $region16
        $region15: #{_rotate_planes.1} parent=11 // pred_region
          %s115 = ssub.s32 16, 16
          %116 = vsyncadd [#allocation6], %s115
          %s118 = sshll.u32 %s0, 4
          %s119 = int_to_ptr.vmem [resolvable:$true] %s118
          %121 = dma.vmem_to_smem %s119, 16, [#allocation3], [#allocation6]
        $region16: #{_rotate_planes.1} parent=11 // pred_fallthru
          _
        // Predicated region
        $region17: #{_rotate_planes.1} parent=11 // pred_check
          %p122 = pneg %p70
        $region18: #{_rotate_planes.1} parent=11 // pred_check_branch
          %124 = sbr.rel (%p122) target = $region20
        $region19: #{_rotate_planes.1} parent=11 // pred_region
          %s126 = ssub.s32 384, 384
          %127 = vsyncadd [#allocation4], %s126
          %s128 = smul.addr %s21, 128
          %s129 = scalar_lea.hbm %s1, %s128
          %s130 = sshll.u32 [#allocation7], 4
          %s131 = int_to_ptr.vmem [resolvable:$true] %s130
          %136 = dma.hbm_to_vmem [thread:$0]  %s129, 384, %s131, [#allocation4], 128, 128, 8
        $region20: #{_rotate_planes.1} parent=11 // pred_fallthru
          _
      $region12: #{_rotate_planes.1} parent=5 // pred_fallthru
        _
      %p137 = scmp.lt.s32.totalorder %s11, 4
      // Predicated region
      $region21: #{_rotate_planes.1} parent=5 // pred_check
        %p138 = pneg %p137
      $region22: #{_rotate_planes.1} parent=5 // pred_check_branch
        %140 = sbr.rel (%p138) target = $region24
      $region23: #{_rotate_planes.1} parent=5 // pred_region
        _
      $region24: #{_rotate_planes.1} parent=5 // pred_fallthru
        _
      %p141 = scmp.le.s32.totalorder 1, %s11
      %p142 = scmp.lt.s32.totalorder %s11, 5
      %p143 = pnand %p141, %p142
      %p144 = pneg %p143
      // Predicated region
      $region25: #{_rotate_planes.1} parent=5 // pred_check
        _
      $region26: #{_rotate_planes.1} parent=5 // pred_check_branch
        %146 = sbr.rel (%p143) target = $region28
      $region27: #{_rotate_planes.1} parent=5 // pred_region
        %s147 = ssub.s32 %s11, 1
        // Predicated region
        $region29: #{_rotate_planes.1} parent=27 // pred_check
          %p148 = pneg %p44
        $region30: #{_rotate_planes.1} parent=27 // pred_check_branch
          %150 = sbr.rel (%p148) target = $region32
        $region31: #{_rotate_planes.1} parent=27 // pred_region
          %151 = dma.done [#allocation6], 16
        $region32: #{_rotate_planes.1} parent=27 // pred_fallthru
          _
        // Predicated region
        $region33: #{_rotate_planes.1} parent=27 // pred_check
          %p152 = pneg %p70
        $region34: #{_rotate_planes.1} parent=27 // pred_check_branch
          %154 = sbr.rel (%p152) target = $region36
        $region35: #{_rotate_planes.1} parent=27 // pred_region
          %155 = dma.done [#allocation4], 384
        $region36: #{_rotate_planes.1} parent=27 // pred_fallthru
          _
        %156 = sfence
        %p157 = pneg %p44
        %p158 = pneg %p41
        %p159 = pneg %p70
        %p160 = pneg %p67
        %p161 = pneg %p96
        %p162 = pneg %p93
        %p163 = scmp.eq.s32.totalorder %s20, 0
        // Predicated region
        $region37: #{_rotate_planes.1} parent=27 // pred_check
          %p164 = pneg %p163
        $region38: #{_rotate_planes.1} parent=27 // pred_check_branch
          %166 = sbr.rel (%p164) target = $region40
        $region39: #{_rotate_planes.1} parent=27 // pred_region
          %v167 = vld [vmem:[#allocation7] sm:$0xff]
          %s168 = scalar_lea.vmem [#allocation7], 8
          %v169 = vld [vmem:[%s168] sm:$0xff]
          %s170 = scalar_lea.vmem [#allocation7], 16
          %v171 = vld [vmem:[%s170] sm:$0xff]
          %172 = vmin.xlane.f32.xlu0 %v167
          %v173 = vpop.xlane.xlu0 %172
          %v174 = vrot.slane %v173, 4
          %v175 = vmin.f32 %v173, %v174
          %v176 = vrot.slane %v175, 2
          %v177 = vmin.f32 %v175, %v176
          %v178 = vrot.slane %v177, 1
          %v179 = vmin.f32 %v177, %v178
          %p180 = scmp.eq.s32.totalorder %s21, 0
          %v181 = vld [vmem:[#allocation2] sm:$0x1]
          %s182 = scalar_select %p180, 1, 0
          %v183 = vstv %s182
          %vm184 = vcmp.eq.s32.totalorder %v183, 1
          %v185 = vsel %vm184, inf, %v181
          %v186 = vmin.f32 %v185, %v179
          %vm187 = vcmask 0
          %188 = vst.msk [vmem:[#allocation2] sm:$0x1] %vm187, %v186
          %189 = vmin.xlane.f32.xlu0 %v169
          %v190 = vpop.xlane.xlu0 %189
          %v191 = vrot.slane %v190, 4
          %v192 = vmin.f32 %v190, %v191
          %v193 = vrot.slane %v192, 2
          %v194 = vmin.f32 %v192, %v193
          %v195 = vrot.slane %v194, 1
          %v196 = vmin.f32 %v194, %v195
          %s197 = scalar_lea.vmem [#allocation2], 1
          %v198 = vld [vmem:[%s197] sm:$0x1]
          %v199 = vsel %vm184, inf, %v198
          %v200 = vmin.f32 %v199, %v196
          %201 = vst.msk [vmem:[%s197] sm:$0x1] %vm187, %v200
          %202 = vmin.xlane.f32.xlu0 %v171
          %v203 = vpop.xlane.xlu0 %202
          %v204 = vrot.slane %v203, 4
          %v205 = vmin.f32 %v203, %v204
          %v206 = vrot.slane %v205, 2
          %v207 = vmin.f32 %v205, %v206
          %v208 = vrot.slane %v207, 1
          %v209 = vmin.f32 %v207, %v208
          %s210 = scalar_lea.vmem [#allocation2], 2
          %v211 = vld [vmem:[%s210] sm:$0x1]
          %v212 = vsel %vm184, inf, %v211
          %v213 = vmin.f32 %v212, %v209
          %214 = vst.msk [vmem:[%s210] sm:$0x1] %vm187, %v213
        $region40: #{_rotate_planes.1} parent=27 // pred_fallthru
          _
        %p215 = scmp.eq.s32.totalorder %s20, 1
        // Predicated region
        $region41: #{_rotate_planes.1} parent=27 // pred_check
          %p216 = pneg %p215
        $region42: #{_rotate_planes.1} parent=27 // pred_check_branch
          %218 = sbr.rel (%p216) target = $region44
        $region43: #{_rotate_planes.1} parent=27 // pred_region
          %v219 = vld [vmem:[#allocation7] sm:$0xff]
          %s220 = scalar_lea.vmem [#allocation7], 8
          %v221 = vld [vmem:[%s220] sm:$0xff]
          %s222 = scalar_lea.vmem [#allocation7], 16
          %v223 = vld [vmem:[%s222] sm:$0xff]
          %v224 = vld [vmem:[#allocation2] sm:$0x1]
          %v226 = vlaneseq
          %v227 = vshrl.u32 %v226, 7
          %v228 = vsub.s32 0, %v227
          %v229 = vrot.slane %v224, %v228
          %230 = vset.pattern.permute.xlu0 0
          %231 = vperm.xlu0 %230, %v229
          %v232 = vpop.permute.xlu0 %231
          %v234 = vsub.f32 %v219, %v232
          %s235 = scalar_lea.vmem [#allocation2], 1
          %v236 = vld [vmem:[%s235] sm:$0x1]
          %v238 = vlaneseq
          %v239 = vshrl.u32 %v238, 7
          %v240 = vsub.s32 0, %v239
          %v241 = vrot.slane %v236, %v240
          %242 = vset.pattern.permute.xlu0 0
          %243 = vperm.xlu0 %242, %v241
          %v244 = vpop.permute.xlu0 %243
          %v246 = vsub.f32 %v221, %v244
          %s247 = scalar_lea.vmem [#allocation2], 2
          %v248 = vld [vmem:[%s247] sm:$0x1]
          %v250 = vlaneseq
          %v251 = vshrl.u32 %v250, 7
          %v252 = vsub.s32 0, %v251
          %v253 = vrot.slane %v248, %v252
          %254 = vset.pattern.permute.xlu0 0
          %255 = vperm.xlu0 %254, %v253
          %v256 = vpop.permute.xlu0 %255
          %v258 = vsub.f32 %v223, %v256
          %s259 = sld [smem:[#allocation3]]
          %v260 = vstv %s259
          %v261 = vmul.f32 %v234, %v260
          %s262 = sld [smem:[#allocation3 + $0x3]]
          %v263 = vstv %s262
          %v264 = vmul.f32 %v246, %v263
          %v265 = vadd.f32 %v261, %v264
          %s266 = sld [smem:[#allocation3 + $0x6]]
          %v267 = vstv %s266
          %v268 = vmul.f32 %v258, %v267
          %v269 = vadd.f32 %v265, %v268
          %s270 = sld [smem:[#allocation3 + $0x1]]
          %v271 = vstv %s270
          %v272 = vmul.f32 %v234, %v271
          %s273 = sld [smem:[#allocation3 + $0x4]]
          %v274 = vstv %s273
          %v275 = vmul.f32 %v246, %v274
          %v276 = vadd.f32 %v272, %v275
          %s277 = sld [smem:[#allocation3 + $0x7]]
          %v278 = vstv %s277
          %v279 = vmul.f32 %v258, %v278
          %v280 = vadd.f32 %v276, %v279
          %s281 = sld [smem:[#allocation3 + $0x2]]
          %v282 = vstv %s281
          %v283 = vmul.f32 %v234, %v282
          %s284 = sld [smem:[#allocation3 + $0x5]]
          %v285 = vstv %s284
          %v286 = vmul.f32 %v246, %v285
          %v287 = vadd.f32 %v283, %v286
          %s288 = sld [smem:[#allocation3 + $0x8]]
          %v289 = vstv %s288
          %v290 = vmul.f32 %v258, %v289
          %v291 = vadd.f32 %v287, %v290
          %292 = vmin.xlane.f32.xlu0 %v269
          %v293 = vpop.xlane.xlu0 %292
          %v294 = vrot.slane %v293, 4
          %v295 = vmin.f32 %v293, %v294
          %v296 = vrot.slane %v295, 2
          %v297 = vmin.f32 %v295, %v296
          %v298 = vrot.slane %v297, 1
          %v299 = vmin.f32 %v297, %v298
          %p300 = scmp.eq.s32.totalorder %s21, 0
          %s301 = scalar_lea.vmem [#allocation2], 3
          %v302 = vld [vmem:[%s301] sm:$0x1]
          %s303 = scalar_select %p300, 1, 0
          %v304 = vstv %s303
          %vm305 = vcmp.eq.s32.totalorder %v304, 1
          %v306 = vsel %vm305, inf, %v302
          %v307 = vmin.f32 %v306, %v299
          %vm308 = vcmask 0
          %309 = vst.msk [vmem:[%s301] sm:$0x1] %vm308, %v307
          %310 = vmin.xlane.f32.xlu0 %v280
          %v311 = vpop.xlane.xlu0 %310
          %v312 = vrot.slane %v311, 4
          %v313 = vmin.f32 %v311, %v312
          %v314 = vrot.slane %v313, 2
          %v315 = vmin.f32 %v313, %v314
          %v316 = vrot.slane %v315, 1
          %v317 = vmin.f32 %v315, %v316
          %s318 = scalar_lea.vmem [#allocation2], 4
          %v319 = vld [vmem:[%s318] sm:$0x1]
          %v320 = vsel %vm305, inf, %v319
          %v321 = vmin.f32 %v320, %v317
          %322 = vst.msk [vmem:[%s318] sm:$0x1] %vm308, %v321
          %323 = vmin.xlane.f32.xlu0 %v291
          %v324 = vpop.xlane.xlu0 %323
          %v325 = vrot.slane %v324, 4
          %v326 = vmin.f32 %v324, %v325
          %v327 = vrot.slane %v326, 2
          %v328 = vmin.f32 %v326, %v327
          %v329 = vrot.slane %v328, 1
          %v330 = vmin.f32 %v328, %v329
          %s331 = scalar_lea.vmem [#allocation2], 5
          %v332 = vld [vmem:[%s331] sm:$0x1]
          %v333 = vsel %vm305, inf, %v332
          %v334 = vmin.f32 %v333, %v330
          %335 = vst.msk [vmem:[%s331] sm:$0x1] %vm308, %v334
        $region44: #{_rotate_planes.1} parent=27 // pred_fallthru
          _
        %p336 = scmp.eq.s32.totalorder %s20, 2
        // Predicated region
        $region45: #{_rotate_planes.1} parent=27 // pred_check
          %p337 = pneg %p336
        $region46: #{_rotate_planes.1} parent=27 // pred_check_branch
          %339 = sbr.rel (%p337) target = $region48
        $region47: #{_rotate_planes.1} parent=27 // pred_region
          %v340 = vld [vmem:[#allocation7] sm:$0xff]
          %s341 = scalar_lea.vmem [#allocation7], 8
          %v342 = vld [vmem:[%s341] sm:$0xff]
          %s343 = scalar_lea.vmem [#allocation7], 16
          %v344 = vld [vmem:[%s343] sm:$0xff]
          %v345 = vld [vmem:[#allocation2] sm:$0x1]
          %v347 = vlaneseq
          %v348 = vshrl.u32 %v347, 7
          %v349 = vsub.s32 0, %v348
          %v350 = vrot.slane %v345, %v349
          %351 = vset.pattern.permute.xlu0 0
          %352 = vperm.xlu0 %351, %v350
          %v353 = vpop.permute.xlu0 %352
          %v355 = vsub.f32 %v340, %v353
          %s356 = scalar_lea.vmem [#allocation2], 1
          %v357 = vld [vmem:[%s356] sm:$0x1]
          %v359 = vlaneseq
          %v360 = vshrl.u32 %v359, 7
          %v361 = vsub.s32 0, %v360
          %v362 = vrot.slane %v357, %v361
          %363 = vset.pattern.permute.xlu0 0
          %364 = vperm.xlu0 %363, %v362
          %v365 = vpop.permute.xlu0 %364
          %v367 = vsub.f32 %v342, %v365
          %s368 = scalar_lea.vmem [#allocation2], 2
          %v369 = vld [vmem:[%s368] sm:$0x1]
          %v371 = vlaneseq
          %v372 = vshrl.u32 %v371, 7
          %v373 = vsub.s32 0, %v372
          %v374 = vrot.slane %v369, %v373
          %375 = vset.pattern.permute.xlu0 0
          %376 = vperm.xlu0 %375, %v374
          %v377 = vpop.permute.xlu0 %376
          %v379 = vsub.f32 %v344, %v377
          %s380 = sld [smem:[#allocation3]]
          %v381 = vstv %s380
          %v382 = vmul.f32 %v355, %v381
          %s383 = sld [smem:[#allocation3 + $0x3]]
          %v384 = vstv %s383
          %v385 = vmul.f32 %v367, %v384
          %v386 = vadd.f32 %v382, %v385
          %s387 = sld [smem:[#allocation3 + $0x6]]
          %v388 = vstv %s387
          %v389 = vmul.f32 %v379, %v388
          %v390 = vadd.f32 %v386, %v389
          %s391 = sld [smem:[#allocation3 + $0x1]]
          %v392 = vstv %s391
          %v393 = vmul.f32 %v355, %v392
          %s394 = sld [smem:[#allocation3 + $0x4]]
          %v395 = vstv %s394
          %v396 = vmul.f32 %v367, %v395
          %v397 = vadd.f32 %v393, %v396
          %s398 = sld [smem:[#allocation3 + $0x7]]
          %v399 = vstv %s398
          %v400 = vmul.f32 %v379, %v399
          %v401 = vadd.f32 %v397, %v400
          %s402 = sld [smem:[#allocation3 + $0x2]]
          %v403 = vstv %s402
          %v404 = vmul.f32 %v355, %v403
          %s405 = sld [smem:[#allocation3 + $0x5]]
          %v406 = vstv %s405
          %v407 = vmul.f32 %v367, %v406
          %v408 = vadd.f32 %v404, %v407
          %s409 = sld [smem:[#allocation3 + $0x8]]
          %v410 = vstv %s409
          %v411 = vmul.f32 %v379, %v410
          %v412 = vadd.f32 %v408, %v411
          %s413 = scalar_lea.vmem [#allocation2], 3
          %v414 = vld [vmem:[%s413] sm:$0x1]
          %v416 = vlaneseq
          %v417 = vshrl.u32 %v416, 7
          %v418 = vsub.s32 0, %v417
          %v419 = vrot.slane %v414, %v418
          %420 = vset.pattern.permute.xlu0 0
          %421 = vperm.xlu0 %420, %v419
          %v422 = vpop.permute.xlu0 %421
          %v424 = vsub.f32 %v390, %v422
          %s425 = scalar_lea.vmem [#allocation2], 4
          %v426 = vld [vmem:[%s425] sm:$0x1]
          %v428 = vlaneseq
          %v429 = vshrl.u32 %v428, 7
          %v430 = vsub.s32 0, %v429
          %v431 = vrot.slane %v426, %v430
          %432 = vset.pattern.permute.xlu0 0
          %433 = vperm.xlu0 %432, %v431
          %v434 = vpop.permute.xlu0 %433
          %v436 = vsub.f32 %v401, %v434
          %s437 = scalar_lea.vmem [#allocation2], 5
          %v438 = vld [vmem:[%s437] sm:$0x1]
          %v440 = vlaneseq
          %v441 = vshrl.u32 %v440, 7
          %v442 = vsub.s32 0, %v441
          %v443 = vrot.slane %v438, %v442
          %444 = vset.pattern.permute.xlu0 0
          %445 = vperm.xlu0 %444, %v443
          %v446 = vpop.permute.xlu0 %445
          %v448 = vsub.f32 %v412, %v446
          %v449 = vround.ne.pseudo %v424
          %v450 = vround.ne.pseudo %v436
          %v451 = vround.ne.pseudo %v448
          %s452 = sld [smem:[#allocation3 + $0x9]]
          %v453 = vstv %s452
          %v454 = vmul.f32 %v449, %v453
          %s455 = sld [smem:[#allocation3 + $0xc]]
          %v456 = vstv %s455
          %v457 = vmul.f32 %v450, %v456
          %v458 = vadd.f32 %v454, %v457
          %s459 = sld [smem:[#allocation3 + $0xf]]
          %v460 = vstv %s459
          %v461 = vmul.f32 %v451, %v460
          %v462 = vadd.f32 %v458, %v461
          %s463 = sld [smem:[#allocation3 + $0xa]]
          %v464 = vstv %s463
          %v465 = vmul.f32 %v449, %v464
          %s466 = sld [smem:[#allocation3 + $0xd]]
          %v467 = vstv %s466
          %v468 = vmul.f32 %v450, %v467
          %v469 = vadd.f32 %v465, %v468
          %s470 = sld [smem:[#allocation3 + $0x10]]
          %v471 = vstv %s470
          %v472 = vmul.f32 %v451, %v471
          %v473 = vadd.f32 %v469, %v472
          %s474 = sld [smem:[#allocation3 + $0xb]]
          %v475 = vstv %s474
          %v476 = vmul.f32 %v449, %v475
          %s477 = sld [smem:[#allocation3 + $0xe]]
          %v478 = vstv %s477
          %v479 = vmul.f32 %v450, %v478
          %v480 = vadd.f32 %v476, %v479
          %s481 = sld [smem:[#allocation3 + $0x11]]
          %v482 = vstv %s481
          %v483 = vmul.f32 %v451, %v482
          %v484 = vadd.f32 %v480, %v483
          %485 = vmin.xlane.f32.xlu0 %v462
          %v486 = vpop.xlane.xlu0 %485
          %v487 = vrot.slane %v486, 4
          %v488 = vmin.f32 %v486, %v487
          %v489 = vrot.slane %v488, 2
          %v490 = vmin.f32 %v488, %v489
          %v491 = vrot.slane %v490, 1
          %v492 = vmin.f32 %v490, %v491
          %p493 = scmp.eq.s32.totalorder %s21, 0
          %s494 = scalar_lea.vmem [#allocation2], 6
          %v495 = vld [vmem:[%s494] sm:$0x1]
          %s496 = scalar_select %p493, 1, 0
          %v497 = vstv %s496
          %vm498 = vcmp.eq.s32.totalorder %v497, 1
          %v499 = vsel %vm498, inf, %v495
          %v500 = vmin.f32 %v499, %v492
          %vm501 = vcmask 0
          %502 = vst.msk [vmem:[%s494] sm:$0x1] %vm501, %v500
          %503 = vmin.xlane.f32.xlu0 %v473
          %v504 = vpop.xlane.xlu0 %503
          %v505 = vrot.slane %v504, 4
          %v506 = vmin.f32 %v504, %v505
          %v507 = vrot.slane %v506, 2
          %v508 = vmin.f32 %v506, %v507
          %v509 = vrot.slane %v508, 1
          %v510 = vmin.f32 %v508, %v509
          %s511 = scalar_lea.vmem [#allocation2], 7
          %v512 = vld [vmem:[%s511] sm:$0x1]
          %v513 = vsel %vm498, inf, %v512
          %v514 = vmin.f32 %v513, %v510
          %515 = vst.msk [vmem:[%s511] sm:$0x1] %vm501, %v514
          %516 = vmin.xlane.f32.xlu0 %v484
          %v517 = vpop.xlane.xlu0 %516
          %v518 = vrot.slane %v517, 4
          %v519 = vmin.f32 %v517, %v518
          %v520 = vrot.slane %v519, 2
          %v521 = vmin.f32 %v519, %v520
          %v522 = vrot.slane %v521, 1
          %v523 = vmin.f32 %v521, %v522
          %s524 = scalar_lea.vmem [#allocation2], 8
          %v525 = vld [vmem:[%s524] sm:$0x1]
          %v526 = vsel %vm498, inf, %v525
          %v527 = vmin.f32 %v526, %v523
          %528 = vst.msk [vmem:[%s524] sm:$0x1] %vm501, %v527
        $region48: #{_rotate_planes.1} parent=27 // pred_fallthru
          _
        %p529 = scmp.eq.s32.totalorder %s20, 3
        // Predicated region
        $region49: #{_rotate_planes.1} parent=27 // pred_check
          %p530 = pneg %p529
        $region50: #{_rotate_planes.1} parent=27 // pred_check_branch
          %532 = sbr.rel (%p530) target = $region52
        $region51: #{_rotate_planes.1} parent=27 // pred_region
          %v533 = vld [vmem:[#allocation7] sm:$0xff]
          %s534 = scalar_lea.vmem [#allocation7], 8
          %v535 = vld [vmem:[%s534] sm:$0xff]
          %s536 = scalar_lea.vmem [#allocation7], 16
          %v537 = vld [vmem:[%s536] sm:$0xff]
          %v538 = vld [vmem:[#allocation2] sm:$0x1]
          %v540 = vlaneseq
          %v541 = vshrl.u32 %v540, 7
          %v542 = vsub.s32 0, %v541
          %v543 = vrot.slane %v538, %v542
          %544 = vset.pattern.permute.xlu0 0
          %545 = vperm.xlu0 %544, %v543
          %v546 = vpop.permute.xlu0 %545
          %v548 = vsub.f32 %v533, %v546
          %s549 = scalar_lea.vmem [#allocation2], 1
          %v550 = vld [vmem:[%s549] sm:$0x1]
          %v552 = vlaneseq
          %v553 = vshrl.u32 %v552, 7
          %v554 = vsub.s32 0, %v553
          %v555 = vrot.slane %v550, %v554
          %556 = vset.pattern.permute.xlu0 0
          %557 = vperm.xlu0 %556, %v555
          %v558 = vpop.permute.xlu0 %557
          %v560 = vsub.f32 %v535, %v558
          %s561 = scalar_lea.vmem [#allocation2], 2
          %v562 = vld [vmem:[%s561] sm:$0x1]
          %v564 = vlaneseq
          %v565 = vshrl.u32 %v564, 7
          %v566 = vsub.s32 0, %v565
          %v567 = vrot.slane %v562, %v566
          %568 = vset.pattern.permute.xlu0 0
          %569 = vperm.xlu0 %568, %v567
          %v570 = vpop.permute.xlu0 %569
          %v572 = vsub.f32 %v537, %v570
          %s573 = sld [smem:[#allocation3]]
          %v574 = vstv %s573
          %v575 = vmul.f32 %v548, %v574
          %s576 = sld [smem:[#allocation3 + $0x3]]
          %v577 = vstv %s576
          %v578 = vmul.f32 %v560, %v577
          %v579 = vadd.f32 %v575, %v578
          %s580 = sld [smem:[#allocation3 + $0x6]]
          %v581 = vstv %s580
          %v582 = vmul.f32 %v572, %v581
          %v583 = vadd.f32 %v579, %v582
          %s584 = sld [smem:[#allocation3 + $0x1]]
          %v585 = vstv %s584
          %v586 = vmul.f32 %v548, %v585
          %s587 = sld [smem:[#allocation3 + $0x4]]
          %v588 = vstv %s587
          %v589 = vmul.f32 %v560, %v588
          %v590 = vadd.f32 %v586, %v589
          %s591 = sld [smem:[#allocation3 + $0x7]]
          %v592 = vstv %s591
          %v593 = vmul.f32 %v572, %v592
          %v594 = vadd.f32 %v590, %v593
          %s595 = sld [smem:[#allocation3 + $0x2]]
          %v596 = vstv %s595
          %v597 = vmul.f32 %v548, %v596
          %s598 = sld [smem:[#allocation3 + $0x5]]
          %v599 = vstv %s598
          %v600 = vmul.f32 %v560, %v599
          %v601 = vadd.f32 %v597, %v600
          %s602 = sld [smem:[#allocation3 + $0x8]]
          %v603 = vstv %s602
          %v604 = vmul.f32 %v572, %v603
          %v605 = vadd.f32 %v601, %v604
          %s606 = scalar_lea.vmem [#allocation2], 3
          %v607 = vld [vmem:[%s606] sm:$0x1]
          %v609 = vlaneseq
          %v610 = vshrl.u32 %v609, 7
          %v611 = vsub.s32 0, %v610
          %v612 = vrot.slane %v607, %v611
          %613 = vset.pattern.permute.xlu0 0
          %614 = vperm.xlu0 %613, %v612
          %v615 = vpop.permute.xlu0 %614
          %v617 = vsub.f32 %v583, %v615
          %s618 = scalar_lea.vmem [#allocation2], 4
          %v619 = vld [vmem:[%s618] sm:$0x1]
          %v621 = vlaneseq
          %v622 = vshrl.u32 %v621, 7
          %v623 = vsub.s32 0, %v622
          %v624 = vrot.slane %v619, %v623
          %625 = vset.pattern.permute.xlu0 0
          %626 = vperm.xlu0 %625, %v624
          %v627 = vpop.permute.xlu0 %626
          %v629 = vsub.f32 %v594, %v627
          %s630 = scalar_lea.vmem [#allocation2], 5
          %v631 = vld [vmem:[%s630] sm:$0x1]
          %v633 = vlaneseq
          %v634 = vshrl.u32 %v633, 7
          %v635 = vsub.s32 0, %v634
          %v636 = vrot.slane %v631, %v635
          %637 = vset.pattern.permute.xlu0 0
          %638 = vperm.xlu0 %637, %v636
          %v639 = vpop.permute.xlu0 %638
          %v641 = vsub.f32 %v605, %v639
          %v642 = vround.ne.pseudo %v617
          %v643 = vround.ne.pseudo %v629
          %v644 = vround.ne.pseudo %v641
          %s645 = sld [smem:[#allocation3 + $0x9]]
          %v646 = vstv %s645
          %v647 = vmul.f32 %v642, %v646
          %s648 = sld [smem:[#allocation3 + $0xc]]
          %v649 = vstv %s648
          %v650 = vmul.f32 %v643, %v649
          %v651 = vadd.f32 %v647, %v650
          %s652 = sld [smem:[#allocation3 + $0xf]]
          %v653 = vstv %s652
          %v654 = vmul.f32 %v644, %v653
          %v655 = vadd.f32 %v651, %v654
          %s656 = sld [smem:[#allocation3 + $0xa]]
          %v657 = vstv %s656
          %v658 = vmul.f32 %v642, %v657
          %s659 = sld [smem:[#allocation3 + $0xd]]
          %v660 = vstv %s659
          %v661 = vmul.f32 %v643, %v660
          %v662 = vadd.f32 %v658, %v661
          %s663 = sld [smem:[#allocation3 + $0x10]]
          %v664 = vstv %s663
          %v665 = vmul.f32 %v644, %v664
          %v666 = vadd.f32 %v662, %v665
          %s667 = sld [smem:[#allocation3 + $0xb]]
          %v668 = vstv %s667
          %v669 = vmul.f32 %v642, %v668
          %s670 = sld [smem:[#allocation3 + $0xe]]
          %v671 = vstv %s670
          %v672 = vmul.f32 %v643, %v671
          %v673 = vadd.f32 %v669, %v672
          %s674 = sld [smem:[#allocation3 + $0x11]]
          %v675 = vstv %s674
          %v676 = vmul.f32 %v644, %v675
          %v677 = vadd.f32 %v673, %v676
          %s678 = scalar_lea.vmem [#allocation2], 6
          %v679 = vld [vmem:[%s678] sm:$0x1]
          %v681 = vlaneseq
          %v682 = vshrl.u32 %v681, 7
          %v683 = vsub.s32 0, %v682
          %v684 = vrot.slane %v679, %v683
          %685 = vset.pattern.permute.xlu0 0
          %686 = vperm.xlu0 %685, %v684
          %v687 = vpop.permute.xlu0 %686
          %v689 = vsub.f32 %v655, %v687
          %s690 = scalar_lea.vmem [#allocation2], 7
          %v691 = vld [vmem:[%s690] sm:$0x1]
          %v693 = vlaneseq
          %v694 = vshrl.u32 %v693, 7
          %v695 = vsub.s32 0, %v694
          %v696 = vrot.slane %v691, %v695
          %697 = vset.pattern.permute.xlu0 0
          %698 = vperm.xlu0 %697, %v696
          %v699 = vpop.permute.xlu0 %698
          %v701 = vsub.f32 %v666, %v699
          %s702 = scalar_lea.vmem [#allocation2], 8
          %v703 = vld [vmem:[%s702] sm:$0x1]
          %v705 = vlaneseq
          %v706 = vshrl.u32 %v705, 7
          %v707 = vsub.s32 0, %v706
          %v708 = vrot.slane %v703, %v707
          %709 = vset.pattern.permute.xlu0 0
          %710 = vperm.xlu0 %709, %v708
          %v711 = vpop.permute.xlu0 %710
          %v713 = vsub.f32 %v677, %v711
          %v714 = vround.ne.pseudo %v689
          %v715 = vround.ne.pseudo %v701
          %v716 = vround.ne.pseudo %v713
          %717 = vst [vmem:[#allocation8] sm:$0xff] %v714
          %s718 = scalar_lea.vmem [#allocation8], 8
          %719 = vst [vmem:[%s718] sm:$0xff] %v715
          %s720 = scalar_lea.vmem [#allocation8], 16
          %721 = vst [vmem:[%s720] sm:$0xff] %v716
        $region52: #{_rotate_planes.1} parent=27 // pred_fallthru
          _
        // Predicated region
        $region53: #{_rotate_planes.1} parent=27 // pred_check
          %p722 = pneg %p93
        $region54: #{_rotate_planes.1} parent=27 // pred_check_branch
          %724 = sbr.rel (%p722) target = $region56
        $region55: #{_rotate_planes.1} parent=27 // pred_region
          %s726 = ssub.s32 384, 384
          %727 = vsyncadd [#allocation5], %s726
          %s728 = smul.addr %s21, 128
          %s729 = scalar_lea.hbm %s2, %s728
          %s730 = sshll.u32 [#allocation8], 4
          %s731 = int_to_ptr.vmem [resolvable:$true] %s730
          %736 = dma.vmem_to_hbm [thread:$0]  %s731, 384, %s729, [#allocation5], 128, 128, 8
        $region56: #{_rotate_planes.1} parent=27 // pred_fallthru
          _
        // Predicated region
        $region57: #{_rotate_planes.1} parent=27 // pred_check
          %p737 = pneg %p93
        $region58: #{_rotate_planes.1} parent=27 // pred_check_branch
          %739 = sbr.rel (%p737) target = $region60
        $region59: #{_rotate_planes.1} parent=27 // pred_region
          %740 = dma.done [#allocation5], 384
        $region60: #{_rotate_planes.1} parent=27 // pred_fallthru
          _
      $region28: #{_rotate_planes.1} parent=5 // pred_fallthru
        _
      %p741 = scmp.le.s32.totalorder 2, %s11
      // Predicated region
      $region61: #{_rotate_planes.1} parent=5 // pred_check
        %p742 = pneg %p741
      $region62: #{_rotate_planes.1} parent=5 // pred_check_branch
        %744 = sbr.rel (%p742) target = $region64
      $region63: #{_rotate_planes.1} parent=5 // pred_region
        %s745 = ssub.s32 %s11, 2
      $region64: #{_rotate_planes.1} parent=5 // pred_fallthru
        _
    $region6: #{_rotate_planes.1} parent=1 // loop_footer
      %s15 = sadd.s32 1, %s11
    $region7: #{_rotate_planes.1} parent=1 // loop_footer_branch
      %10 = sbr.rel target = $region3
    $region8: #{_rotate_planes.1} parent=1 // loop_exit
      _
    %746 = vsyncpa [#allocation4], 1
    %s747 = scalar_lea.sflag [#allocation4], 1
    %748 = vsyncpa %s747, 1
    %749 = vsyncpa [#allocation5], 1
    %s750 = scalar_lea.sflag [#allocation5], 1
    %751 = vsyncpa %s750, 1
    %752 = vsyncpa [#allocation6], 1
    %s753 = scalar_lea.sflag [#allocation6], 1
    %754 = vsyncpa %s753, 1

</llo_original>
